<compile_context>
chip_gen: v5e
topology: v5e:2x2
jax: 0.10.0
libtpu: 0.0.40
codegen_flags: <defaults>
</compile_context>

<pallas_src>
import jax
import jax.numpy as jnp
from jax.experimental import pallas as pl
from jax.experimental.pallas import tpu as pltpu

B = 2                       # real batch
B_EFF = 8                   # batch zero-padded to one sublane tile
C_IN = 6                    # input channels
H = W = 8                   # board spatial size (implied by 256*4*4 fc1 input)
K = 5                       # conv kernel
C_OUT = 256                 # conv output channels
PATCH = C_IN * K * K        # 150
PATCH_PAD = 256             # 128-aligned K dim for the conv matmul
N_POS = (H // 2) * (W // 2)            # 16 pooled positions per board
N_POOL_EFF = N_POS * B_EFF             # 128 pooled rows (p, b)
N_PIX_EFF = 4 * N_POOL_EFF             # 512 conv-output rows (dh, dw, p, b)
FC_IN = C_OUT * N_POS + 5              # 4101
H1, H2, H3, H4 = 512, 256, 128, 32

# packed parameter slab layout: (16 rows, 512 lanes) f32, static offsets
SLAB_ROWS = 16
ROW_W1X0 = 0          # rows 0..4 : w1x (5, 512)
ROW_B1 = 5            # row 5     : b1 (512)
ROW_BVEC = 6          # row 6     : [b2 @0 | b3 @256 | b4 @384]
ROW_MISC = 7          # row 7     : [conv_b @0 | w5 @256 | b5 @384]
ROW_X2 = 8            # rows 8..15: x2 (batch-padded) in lanes 0..4


# --------------------------------------------------------------------------
# Fused kernel: im2col-conv -> +bias -> ReLU -> 2x2 maxpool -> fc1..fc5
# grid = (N_POS,): one streamed w1f block per step, everything else resident.
# --------------------------------------------------------------------------
def fused_forward_kernel(patches_ref, cw_ref, w1f_ref, w2_ref, w3_ref, w4_ref,
                         slab_ref, o_ref, pooled_ref, h_ref):
    f32, bf16 = jnp.float32, jnp.bfloat16
    p = pl.program_id(0)

    # ---- step 0: conv as im2col matmul + bias + ReLU + 2x2 maxpool, fc1 init
    @pl.when(p == 0)
    def _():
        cb = slab_ref[ROW_MISC:ROW_MISC + 1, 0:C_OUT]                  # (1,256)
        y = jnp.dot(patches_ref[...], cw_ref[...], preferred_element_type=f32)
        y = jnp.maximum(y + cb, 0.0)                                   # (512,256)
        # rows ordered (dh, dw, p, b): the 4 window partners of a pooled pixel
        # are the same offset in each contiguous 128-row (dh, dw) group.
        n = N_POOL_EFF
        pooled_ref[...] = jnp.maximum(jnp.maximum(y[0 * n:1 * n], y[1 * n:2 * n]),
                                      jnp.maximum(y[2 * n:3 * n], y[3 * n:4 * n]))
        # fc1: x2 part + bias into the accumulator scratch
        x2b = slab_ref[ROW_X2:ROW_X2 + B_EFF, 0:5]                     # (8,5)
        w1x = slab_ref[ROW_W1X0:ROW_W1X0 + 5, :]                       # (5,512)
        b1 = slab_ref[ROW_B1:ROW_B1 + 1, :]                            # (1,512)
        h_ref[...] = jnp.dot(x2b, w1x, preferred_element_type=f32) + b1

    # ---- every step: accumulate one per-position fc1 block (bf16 MXU, f32 acc)
    r0 = pl.multiple_of(p * B_EFF, B_EFF)
    blk = pooled_ref[pl.ds(r0, B_EFF), :].astype(bf16)                 # (8,256)
    h_ref[...] += jnp.dot(blk, w1f_ref[0], preferred_element_type=f32)

    # ---- last step: fc2..fc4 (+ReLU), fc5 (+sigmoid)
    @pl.when(p == pl.num_programs(0) - 1)
    def _():
        b2 = slab_ref[ROW_BVEC:ROW_BVEC + 1, 0:H2]
        b3 = slab_ref[ROW_BVEC:ROW_BVEC + 1, H2:H2 + H3]
        b4 = slab_ref[ROW_BVEC:ROW_BVEC + 1, H2 + H3:H2 + H3 + H4]
        w5 = slab_ref[ROW_MISC:ROW_MISC + 1, 256:256 + H4]             # (1,32)
        b5 = slab_ref[ROW_MISC:ROW_MISC + 1, 384:385]                  # (1,1)
        h1 = jnp.maximum(h_ref[...], 0.0)
        h2 = jnp.maximum(jnp.dot(h1.astype(bf16), w2_ref[...],
                                 preferred_element_type=f32) + b2, 0.0)
        h3 = jnp.maximum(jnp.dot(h2, w3_ref[...],
                                 preferred_element_type=f32) + b3, 0.0)
        h4 = jnp.maximum(jnp.dot(h3, w4_ref[...],
                                 preferred_element_type=f32) + b4, 0.0)
        # fc5 as multiply + lane reduce (avoids a 1-lane-wide MXU matmul)
        z = jnp.sum(h4 * w5, axis=-1, keepdims=True) + b5
        o_ref[...] = 1.0 / (1.0 + jnp.exp(-z))


# --------------------------------------------------------------------------
# XLA-side glue (runs inside the jit, per call): static-slice im2col
# --------------------------------------------------------------------------
def build_patches(xb):
    # xb: (B_EFF, 6, 8, 8) NCHW (batch already zero-padded), padding=2
    xp = jnp.pad(xb, ((0, 0), (0, 0), (2, 2), (2, 2)))          # (8, 6, 12, 12)
    slices = [xp[:, :, kh:kh + H, kw:kw + W]
              for kh in range(K) for kw in range(K)]             # 25 x (8,6,8,8)
    pat = jnp.stack(slices, axis=0)                              # (25, 8, 6, 8, 8)
    # [kh, kw, b, c, ph, dh, pw, dw]
    pat = pat.reshape(K, K, B_EFF, C_IN, H // 2, 2, W // 2, 2)
    # rows -> (dh, dw, ph, pw, b), cols -> (c, kh, kw)  (matches OIHW flatten)
    pat = pat.transpose(5, 7, 4, 6, 2, 3, 0, 1).reshape(N_PIX_EFF, PATCH)
    pat = jnp.pad(pat, ((0, 0), (0, PATCH_PAD - PATCH)))         # (512, 256)
    return pat.astype(jnp.bfloat16)


# --------------------------------------------------------------------------
# Parameters: nn-style params + one-time kernel-friendly re-layout
# --------------------------------------------------------------------------
def make_params(seed=42):
    keys = jax.random.split(jax.random.PRNGKey(seed), 12)
    scale = lambda fan_in: 1.0 / jnp.sqrt(jnp.float32(fan_in))
    conv_w = jax.random.normal(keys[0], (C_OUT, C_IN, K, K), jnp.float32) * scale(PATCH)
    conv_b = jax.random.normal(keys[1], (C_OUT,), jnp.float32) * 0.01
    dims = [(FC_IN, H1), (H1, H2), (H2, H3), (H3, H4), (H4, 1)]
    fcs = []
    for i, (din, dout) in enumerate(dims):
        w = jax.random.normal(keys[2 + 2 * i], (din, dout), jnp.float32) * scale(din)
        b = jax.random.normal(keys[3 + 2 * i], (1, dout), jnp.float32) * 0.01
        fcs.append((w, b))
    return conv_w, conv_b, fcs


def prepare_params(params):
    """One-time weight re-layout, kept OUT of the per-call jitted forward."""
    conv_w, conv_b, fcs = params
    (w1, b1), (w2, b2), (w3, b3), (w4, b4), (w5, b5) = fcs
    # conv weight: (C_OUT, C_IN*K*K) -> (PATCH_PAD, C_OUT), bf16
    cw = jnp.pad(conv_w.reshape(C_OUT, PATCH).T,
                 ((0, PATCH_PAD - PATCH), (0, 0))).astype(jnp.bfloat16)
    # fc1 feature rows (c*16 + p) -> per-position blocks [p][c] -> (16,256,512) bf16
    w1f = (w1[:C_OUT * N_POS].reshape(C_OUT, N_POS, H1)
           .transpose(1, 0, 2).astype(jnp.bfloat16))
    # pack every tiny operand into one (16, 512) f32 slab
    slab = jnp.zeros((SLAB_ROWS, H1), jnp.float32)
    slab = slab.at[ROW_W1X0:ROW_W1X0 + 5, :].set(w1[C_OUT * N_POS:])
    slab = slab.at[ROW_B1, :].set(b1[0])
    slab = slab.at[ROW_BVEC, 0:H2].set(b2[0])
    slab = slab.at[ROW_BVEC, H2:H2 + H3].set(b3[0])
    slab = slab.at[ROW_BVEC, H2 + H3:H2 + H3 + H4].set(b4[0])
    slab = slab.at[ROW_MISC, 0:C_OUT].set(conv_b)
    slab = slab.at[ROW_MISC, 256:256 + H4].set(w5[:, 0])
    slab = slab.at[ROW_MISC, 384].set(b5[0, 0])
    return dict(cw=cw, w1f=w1f, w2=w2.astype(jnp.bfloat16),
                w3=w3, w4=w4, slab=slab)


# --------------------------------------------------------------------------
# Forward (jitted): batch pad, im2col, single pipelined pallas_call
# --------------------------------------------------------------------------
def chess_evaluator(x, x2, prepped):
    xb = jnp.pad(x, ((0, B_EFF - B), (0, 0), (0, 0), (0, 0)))
    patches = build_patches(xb)                                   # (512,256) bf16
    slab = prepped["slab"].at[ROW_X2:ROW_X2 + B, 0:5].set(x2.reshape(B, 5))

    def const(shape):
        return pl.BlockSpec(shape, lambda p, _s=shape: (0,) * len(_s))

    out = pl.pallas_call(
        fused_forward_kernel,
        out_shape=jax.ShapeDtypeStruct((B_EFF, 1), jnp.float32),
        grid=(N_POS,),
        in_specs=[
            const((N_PIX_EFF, PATCH_PAD)),                        # patches (resident)
            const((PATCH_PAD, C_OUT)),                            # conv weight
            pl.BlockSpec((1, C_OUT, H1), lambda p: (p, 0, 0)),    # w1f (streamed)
            const((H1, H2)),                                      # w2
            const((H2, H3)),                                      # w3
            const((H3, H4)),                                      # w4
            const((SLAB_ROWS, H1)),                               # packed slab
        ],
        out_specs=const((B_EFF, 1)),
        scratch_shapes=[pltpu.VMEM((N_POOL_EFF, C_OUT), jnp.float32),  # pooled
                        pltpu.VMEM((B_EFF, H1), jnp.float32)],         # fc1 acc
        compiler_params=pltpu.CompilerParams(
            dimension_semantics=("arbitrary",),
            vmem_limit_bytes=16 * 1024 * 1024),
    )(patches, prepped["cw"], prepped["w1f"], prepped["w2"],
      prepped["w3"], prepped["w4"], slab)
    return out[:B]                                                # drop padded rows


# --------------------------------------------------------------------------
# Pure-JAX fp32 reference (for correctness check)
# --------------------------------------------------------------------------
def reference(x, x2, params):
    conv_w, conv_b, fcs = params
    y = jax.lax.conv_general_dilated(
        x, conv_w, window_strides=(1, 1), padding=((2, 2), (2, 2)),
        dimension_numbers=("NCHW", "OIHW", "NCHW"))
    y = jax.nn.relu(y + conv_b[None, :, None, None])
    y = jax.lax.reduce_window(y, -jnp.inf, jax.lax.max,
                              (1, 1, 2, 2), (1, 1, 2, 2), "VALID")
    h = jnp.concatenate([y.reshape(B, -1), x2.reshape(B, 5)], axis=1)
    for i, (w, b) in enumerate(fcs):
        h = h @ w + b
        h = jax.nn.relu(h) if i < len(fcs) - 1 else jax.nn.sigmoid(h)
    return h


if __name__ == "__main__":
    k1, k2 = jax.random.split(jax.random.PRNGKey(0))
    x = jax.random.normal(k1, (B, C_IN, H, W), jnp.float32)
    x2 = jax.random.normal(k2, (B, 5), jnp.float32)
    params = make_params()
    prepped = prepare_params(params)        # one-time re-layout, outside the jit

    fwd = jax.jit(chess_evaluator)
    out = fwd(x, x2, prepped)
    jax.block_until_ready(out)

    ref = reference(x, x2, params)
    assert out.shape == (B, 1)
    # bf16 weight/patch storage (perf review): quantization error at the
    # post-sigmoid output is ~1e-4..1e-3, so check at 2e-3 rather than 1e-4.
    assert jnp.allclose(out, ref, atol=2e-3, rtol=2e-3), (out, ref)
    print("KERNEL_OK")
</pallas_src>

<mosaic_0001>
module attributes {stable_mosaic.version = 11 : i64} {
  func.func @fused_forward_kernel(%arg0: i32, %arg1: memref<512x256xbf16, #tpu.memory_space<vmem>>, %arg2: memref<256x256xbf16, #tpu.memory_space<vmem>>, %arg3: memref<1x256x512xbf16, #tpu.memory_space<vmem>>, %arg4: memref<512x256xbf16, #tpu.memory_space<vmem>>, %arg5: memref<256x128xf32, #tpu.memory_space<vmem>>, %arg6: memref<128x32xf32, #tpu.memory_space<vmem>>, %arg7: memref<16x512xf32, #tpu.memory_space<vmem>>, %arg8: memref<8x1xf32, #tpu.memory_space<vmem>>, %arg9: memref<128x256xf32, #tpu.memory_space<vmem>>, %arg10: memref<8x512xf32, #tpu.memory_space<vmem>>) attributes {dimension_semantics = [#tpu.dimension_semantics<arbitrary>], iteration_bounds = array<i64: 16>, scalar_prefetch = 0 : i64, scratch_operands = 2 : i64, tpu.core_type = #tpu.core_type<tc>, window_params = [{pipeline_mode = #tpu.pipeline_mode<synchronous>, transform_indices = @transform_0, window_bounds = array<i64: 512, 256>}, {pipeline_mode = #tpu.pipeline_mode<synchronous>, transform_indices = @transform_1, window_bounds = array<i64: 256, 256>}, {transform_indices = @transform_2, window_bounds = array<i64: 1, 256, 512>}, {pipeline_mode = #tpu.pipeline_mode<synchronous>, transform_indices = @transform_3, window_bounds = array<i64: 512, 256>}, {pipeline_mode = #tpu.pipeline_mode<synchronous>, transform_indices = @transform_4, window_bounds = array<i64: 256, 128>}, {pipeline_mode = #tpu.pipeline_mode<synchronous>, transform_indices = @transform_5, window_bounds = array<i64: 128, 32>}, {pipeline_mode = #tpu.pipeline_mode<synchronous>, transform_indices = @transform_6, window_bounds = array<i64: 16, 512>}, {pipeline_mode = #tpu.pipeline_mode<synchronous>, transform_indices = @transform_7, window_bounds = array<i64: 8, 1>}]} {
    %c0_i32 = arith.constant 0 : i32
    %0 = arith.cmpi eq, %arg0, %c0_i32 : i32
    %1 = arith.extui %0 : i1 to i32
    %c0_i32_0 = arith.constant 0 : i32
    %2 = arith.cmpi ne, %1, %c0_i32_0 : i32
    scf.if %2 {
      %c7 = arith.constant 7 : index
      %c0_9 = arith.constant 0 : index
      %17 = vector.load %arg7[%c7, %c0_9] : memref<16x512xf32, #tpu.memory_space<vmem>>, vector<1x256xf32>
      %c0_10 = arith.constant 0 : index
      %c0_11 = arith.constant 0 : index
      %18 = vector.load %arg1[%c0_10, %c0_11] : memref<512x256xbf16, #tpu.memory_space<vmem>>, vector<512x256xbf16>
      %c0_12 = arith.constant 0 : index
      %c0_13 = arith.constant 0 : index
      %19 = vector.load %arg2[%c0_12, %c0_13] : memref<256x256xbf16, #tpu.memory_space<vmem>>, vector<256x256xbf16>
      %cst_14 = arith.constant dense<0.000000e+00> : vector<512x256xf32>
      %20 = tpu.matmul %18, %19, %cst_14 {dimension_numbers = #tpu.dot_dimension_numbers<[1], [0], [0], [1], [0, 0, 1, 1], [], []>} : vector<512x256xbf16>, vector<256x256xbf16>, vector<512x256xf32> -> vector<512x256xf32>
      %21 = vector.broadcast %17 : vector<1x256xf32> to vector<512x256xf32>
      %22 = arith.addf %20, %21 : vector<512x256xf32>
      %cst_15 = arith.constant 0.000000e+00 : f32
      %23 = vector.broadcast %cst_15 : f32 to vector<512x256xf32>
      %24 = arith.maximumf %22, %23 : vector<512x256xf32>
      %25 = vector.extract_strided_slice %24 {offsets = [0, 0], sizes = [128, 256], strides = [1, 1]} : vector<512x256xf32> to vector<128x256xf32>
      %26 = vector.extract_strided_slice %24 {offsets = [128, 0], sizes = [128, 256], strides = [1, 1]} : vector<512x256xf32> to vector<128x256xf32>
      %27 = arith.maximumf %25, %26 : vector<128x256xf32>
      %28 = vector.extract_strided_slice %24 {offsets = [256, 0], sizes = [128, 256], strides = [1, 1]} : vector<512x256xf32> to vector<128x256xf32>
      %29 = vector.extract_strided_slice %24 {offsets = [384, 0], sizes = [128, 256], strides = [1, 1]} : vector<512x256xf32> to vector<128x256xf32>
      %30 = arith.maximumf %28, %29 : vector<128x256xf32>
      %31 = arith.maximumf %27, %30 : vector<128x256xf32>
      %c0_16 = arith.constant 0 : index
      %c0_17 = arith.constant 0 : index
      %32 = vector.load %arg9[%c0_16, %c0_17] : memref<128x256xf32, #tpu.memory_space<vmem>>, vector<128x256xf32>
      tpu.vector_store %arg9[%c0_16, %c0_17], %31 {strides = array<i32>} : memref<128x256xf32, #tpu.memory_space<vmem>>, vector<128x256xf32>,
      %c8 = arith.constant 8 : index
      %c0_18 = arith.constant 0 : index
      %33 = vector.load %arg7[%c8, %c0_18] : memref<16x512xf32, #tpu.memory_space<vmem>>, vector<8x5xf32>
      %c0_19 = arith.constant 0 : index
      %c0_20 = arith.constant 0 : index
      %34 = vector.load %arg7[%c0_19, %c0_20] : memref<16x512xf32, #tpu.memory_space<vmem>>, vector<5x512xf32>
      %c5 = arith.constant 5 : index
      %c0_21 = arith.constant 0 : index
      %35 = vector.load %arg7[%c5, %c0_21] : memref<16x512xf32, #tpu.memory_space<vmem>>, vector<1x512xf32>
      %cst_22 = arith.constant dense<0.000000e+00> : vector<8x512xf32>
      %36 = tpu.matmul %33, %34, %cst_22 {dimension_numbers = #tpu.dot_dimension_numbers<[1], [0], [0], [1], [0, 0, 1, 1], [], []>} : vector<8x5xf32>, vector<5x512xf32>, vector<8x512xf32> -> vector<8x512xf32>
      %37 = vector.broadcast %35 : vector<1x512xf32> to vector<8x512xf32>
      %38 = arith.addf %36, %37 : vector<8x512xf32>
      %c0_23 = arith.constant 0 : index
      %c0_24 = arith.constant 0 : index
      %39 = vector.load %arg10[%c0_23, %c0_24] : memref<8x512xf32, #tpu.memory_space<vmem>>, vector<8x512xf32>
      tpu.vector_store %arg10[%c0_23, %c0_24], %38 {strides = array<i32>} : memref<8x512xf32, #tpu.memory_space<vmem>>, vector<8x512xf32>,
    } else {
    }
    %c8_i32 = arith.constant 8 : i32
    %3 = arith.muli %arg0, %c8_i32 : i32
    %4 = tpu.assume_multiple %3, 8 : i32
    %5 = arith.index_cast %4 : i32 to index
    %c0 = arith.constant 0 : index
    %6 = vector.load %arg9[%5, %c0] : memref<128x256xf32, #tpu.memory_space<vmem>>, vector<8x256xf32>
    %7 = arith.truncf %6 : vector<8x256xf32> to vector<8x256xbf16>
    %c0_1 = arith.constant 0 : index
    %c0_2 = arith.constant 0 : index
    %8 = vector.load %arg10[%c0_1, %c0_2] : memref<8x512xf32, #tpu.memory_space<vmem>>, vector<8x512xf32>
    %c0_3 = arith.constant 0 : index
    %c0_4 = arith.constant 0 : index
    %c0_5 = arith.constant 0 : index
    %9 = vector.load %arg3[%c0_3, %c0_4, %c0_5] : memref<1x256x512xbf16, #tpu.memory_space<vmem>>, vector<1x256x512xbf16>
    %10 = vector.shape_cast %9 : vector<1x256x512xbf16> to vector<256x512xbf16>
    %cst = arith.constant dense<0.000000e+00> : vector<8x512xf32>
    %11 = tpu.matmul %7, %10, %cst {dimension_numbers = #tpu.dot_dimension_numbers<[1], [0], [0], [1], [0, 0, 1, 1], [], []>} : vector<8x256xbf16>, vector<256x512xbf16>, vector<8x512xf32> -> vector<8x512xf32>
    %12 = arith.addf %8, %11 : vector<8x512xf32>
    %c0_6 = arith.constant 0 : index
    %c0_7 = arith.constant 0 : index
    %13 = vector.load %arg10[%c0_6, %c0_7] : memref<8x512xf32, #tpu.memory_space<vmem>>, vector<8x512xf32>
    tpu.vector_store %arg10[%c0_6, %c0_7], %12 {strides = array<i32>} : memref<8x512xf32, #tpu.memory_space<vmem>>, vector<8x512xf32>,
    %c15_i32 = arith.constant 15 : i32
    %14 = arith.cmpi eq, %arg0, %c15_i32 : i32
    %15 = arith.extui %14 : i1 to i32
    %c0_i32_8 = arith.constant 0 : i32
    %16 = arith.cmpi ne, %15, %c0_i32_8 : i32
    scf.if %16 {
      %c6 = arith.constant 6 : index
      %c0_9 = arith.constant 0 : index
      %17 = vector.load %arg7[%c6, %c0_9] : memref<16x512xf32, #tpu.memory_space<vmem>>, vector<1x256xf32>
      %c6_10 = arith.constant 6 : index
      %c256 = arith.constant 256 : index
      %18 = vector.load %arg7[%c6_10, %c256] : memref<16x512xf32, #tpu.memory_space<vmem>>, vector<1x128xf32>
      %c6_11 = arith.constant 6 : index
      %c384 = arith.constant 384 : index
      %19 = vector.load %arg7[%c6_11, %c384] : memref<16x512xf32, #tpu.memory_space<vmem>>, vector<1x32xf32>
      %c7 = arith.constant 7 : index
      %c256_12 = arith.constant 256 : index
      %20 = vector.load %arg7[%c7, %c256_12] : memref<16x512xf32, #tpu.memory_space<vmem>>, vector<1x32xf32>
      %c7_13 = arith.constant 7 : index
      %c384_14 = arith.constant 384 : index
      %21 = vector.load %arg7[%c7_13, %c384_14] : memref<16x512xf32, #tpu.memory_space<vmem>>, vector<1x1xf32>
      %c0_15 = arith.constant 0 : index
      %c0_16 = arith.constant 0 : index
      %22 = vector.load %arg10[%c0_15, %c0_16] : memref<8x512xf32, #tpu.memory_space<vmem>>, vector<8x512xf32>
      %cst_17 = arith.constant 0.000000e+00 : f32
      %23 = vector.broadcast %cst_17 : f32 to vector<8x512xf32>
      %24 = arith.maximumf %22, %23 : vector<8x512xf32>
      %25 = arith.truncf %24 : vector<8x512xf32> to vector<8x512xbf16>
      %c0_18 = arith.constant 0 : index
      %c0_19 = arith.constant 0 : index
      %26 = vector.load %arg4[%c0_18, %c0_19] : memref<512x256xbf16, #tpu.memory_space<vmem>>, vector<512x256xbf16>
      %cst_20 = arith.constant dense<0.000000e+00> : vector<8x256xf32>
      %27 = tpu.matmul %25, %26, %cst_20 {dimension_numbers = #tpu.dot_dimension_numbers<[1], [0], [0], [1], [0, 0, 1, 1], [], []>} : vector<8x512xbf16>, vector<512x256xbf16>, vector<8x256xf32> -> vector<8x256xf32>
      %28 = vector.broadcast %17 : vector<1x256xf32> to vector<8x256xf32>
      %29 = arith.addf %27, %28 : vector<8x256xf32>
      %cst_21 = arith.constant 0.000000e+00 : f32
      %30 = vector.broadcast %cst_21 : f32 to vector<8x256xf32>
      %31 = arith.maximumf %29, %30 : vector<8x256xf32>
      %c0_22 = arith.constant 0 : index
      %c0_23 = arith.constant 0 : index
      %32 = vector.load %arg5[%c0_22, %c0_23] : memref<256x128xf32, #tpu.memory_space<vmem>>, vector<256x128xf32>
      %cst_24 = arith.constant dense<0.000000e+00> : vector<8x128xf32>
      %33 = tpu.matmul %31, %32, %cst_24 {dimension_numbers = #tpu.dot_dimension_numbers<[1], [0], [0], [1], [0, 0, 1, 1], [], []>} : vector<8x256xf32>, vector<256x128xf32>, vector<8x128xf32> -> vector<8x128xf32>
      %34 = vector.broadcast %18 : vector<1x128xf32> to vector<8x128xf32>
      %35 = arith.addf %33, %34 : vector<8x128xf32>
      %cst_25 = arith.constant 0.000000e+00 : f32
      %36 = vector.broadcast %cst_25 : f32 to vector<8x128xf32>
      %37 = arith.maximumf %35, %36 : vector<8x128xf32>
      %c0_26 = arith.constant 0 : index
      %c0_27 = arith.constant 0 : index
      %38 = vector.load %arg6[%c0_26, %c0_27] : memref<128x32xf32, #tpu.memory_space<vmem>>, vector<128x32xf32>
      %cst_28 = arith.constant dense<0.000000e+00> : vector<8x32xf32>
      %39 = tpu.matmul %37, %38, %cst_28 {dimension_numbers = #tpu.dot_dimension_numbers<[1], [0], [0], [1], [0, 0, 1, 1], [], []>} : vector<8x128xf32>, vector<128x32xf32>, vector<8x32xf32> -> vector<8x32xf32>
      %40 = vector.broadcast %19 : vector<1x32xf32> to vector<8x32xf32>
      %41 = arith.addf %39, %40 : vector<8x32xf32>
      %cst_29 = arith.constant 0.000000e+00 : f32
      %42 = vector.broadcast %cst_29 : f32 to vector<8x32xf32>
      %43 = arith.maximumf %41, %42 : vector<8x32xf32>
      %44 = vector.broadcast %20 : vector<1x32xf32> to vector<8x32xf32>
      %45 = arith.mulf %43, %44 : vector<8x32xf32>
      %cst_30 = arith.constant dense<0.000000e+00> : vector<8xf32>
      %46 = vector.multi_reduction <add>, %45, %cst_30 [1] : vector<8x32xf32> to vector<8xf32>
      %47 = vector.shape_cast %46 : vector<8xf32> to vector<8x1xf32>
      %48 = vector.broadcast %21 : vector<1x1xf32> to vector<8x1xf32>
      %49 = arith.addf %47, %48 : vector<8x1xf32>
      %cst_31 = arith.constant 0.000000e+00 : f32
      %50 = vector.broadcast %cst_31 : f32 to vector<8x1xf32>
      %51 = arith.subf %50, %49 : vector<8x1xf32>
      %52 = math.exp %51 : vector<8x1xf32>
      %cst_32 = arith.constant 1.000000e+00 : f32
      %53 = vector.broadcast %cst_32 : f32 to vector<8x1xf32>
      %54 = arith.addf %53, %52 : vector<8x1xf32>
      %cst_33 = arith.constant 1.000000e+00 : f32
      %55 = vector.broadcast %cst_33 : f32 to vector<8x1xf32>
      %56 = arith.divf %55, %54 : vector<8x1xf32>
      %c0_34 = arith.constant 0 : index
      %c0_35 = arith.constant 0 : index
      %57 = vector.load %arg8[%c0_34, %c0_35] : memref<8x1xf32, #tpu.memory_space<vmem>>, vector<8x1xf32>
      tpu.vector_store %arg8[%c0_34, %c0_35], %56 {strides = array<i32>} : memref<8x1xf32, #tpu.memory_space<vmem>>, vector<8x1xf32>,
    } else {
    }
    return
  }
  func.func @transform_0(%arg0: i32) -> (i32, i32) {
    %c0_i32 = arith.constant 0 : i32
    %c0_i32_0 = arith.constant 0 : i32
    %c0_i32_1 = arith.constant 0 : i32
    return %c0_i32, %c0_i32_0 : i32, i32
  }
  func.func @transform_1(%arg0: i32) -> (i32, i32) {
    %c0_i32 = arith.constant 0 : i32
    %c0_i32_0 = arith.constant 0 : i32
    %c0_i32_1 = arith.constant 0 : i32
    return %c0_i32, %c0_i32_0 : i32, i32
  }
  func.func @transform_2(%arg0: i32) -> (i32, i32, i32) {
    %c0_i32 = arith.constant 0 : i32
    %c0_i32_0 = arith.constant 0 : i32
    %c0_i32_1 = arith.constant 0 : i32
    return %arg0, %c0_i32, %c0_i32_0 : i32, i32, i32
  }
  func.func @transform_3(%arg0: i32) -> (i32, i32) {
    %c0_i32 = arith.constant 0 : i32
    %c0_i32_0 = arith.constant 0 : i32
    %c0_i32_1 = arith.constant 0 : i32
    return %c0_i32, %c0_i32_0 : i32, i32
  }
  func.func @transform_4(%arg0: i32) -> (i32, i32) {
    %c0_i32 = arith.constant 0 : i32
    %c0_i32_0 = arith.constant 0 : i32
    %c0_i32_1 = arith.constant 0 : i32
    return %c0_i32, %c0_i32_0 : i32, i32
  }
  func.func @transform_5(%arg0: i32) -> (i32, i32) {
    %c0_i32 = arith.constant 0 : i32
    %c0_i32_0 = arith.constant 0 : i32
    %c0_i32_1 = arith.constant 0 : i32
    return %c0_i32, %c0_i32_0 : i32, i32
  }
  func.func @transform_6(%arg0: i32) -> (i32, i32) {
    %c0_i32 = arith.constant 0 : i32
    %c0_i32_0 = arith.constant 0 : i32
    %c0_i32_1 = arith.constant 0 : i32
    return %c0_i32, %c0_i32_0 : i32, i32
  }
  func.func @transform_7(%arg0: i32) -> (i32, i32) {
    %c0_i32 = arith.constant 0 : i32
    %c0_i32_0 = arith.constant 0 : i32
    %c0_i32_1 = arith.constant 0 : i32
    return %c0_i32, %c0_i32_0 : i32, i32
  }
}

</mosaic_0001>

<llo_original>
// kernel: chess_evaluator.1
$region0: #{chess_evaluator.1}
  #allocation0 [shape = 'u32[]', space=smem, size = 0x4, offset = 0x4, fixed_abs, tag = 'smem constant byte address 0x4 - core index']
  #allocation1 [shape = 'u32[72,128]{1,0:T(1,128)}', space=vmem, size = 0x9000, scoped, tag = 'internal scratch']
  #allocation2 [shape = 'f32[128,256]{1,0:T(8,128)}', space=vmem, size = 0x20000, scoped, tag = 'scratch operand']
  #allocation3 [shape = 'f32[8,512]{1,0:T(8,128)}', space=vmem, size = 0x4000, scoped, tag = 'scratch operand']
  %s0 = inlined_call_operand.vmem [shape: bf16[512,256], index: 0, kind: input, shape index: {}]
  %s1 = inlined_call_operand.vmem [shape: bf16[256,256], index: 1, kind: input, shape index: {}]
  %s2 = inlined_call_operand.vmem [shape: bf16[16,256,512], index: 2, kind: input, shape index: {}]
  %s3 = inlined_call_operand.vmem [shape: bf16[512,256], index: 3, kind: input, shape index: {}]
  %s4 = inlined_call_operand.vmem [shape: f32[256,128], index: 4, kind: input, shape index: {}]
  %s5 = inlined_call_operand.vmem [shape: f32[128,32], index: 5, kind: input, shape index: {}]
  %s6 = inlined_call_operand.vmem [shape: f32[16,512], index: 6, kind: input, shape index: {}]
  %s7 = inlined_call_operand.vmem [shape: f32[8,1], index: 7, kind: output, shape index: {}]
  %s8 = sld [smem:[#allocation0]]
  $region69: #{chess_evaluator.1} parent=0
    _
  %s10 = ssub.s32 1, %s8
  %s11 = scalar_select 0, %s10, %s8
  loop: start=0, step=1, limit=18
  $region2: #{chess_evaluator.1} parent=0 // loop_pre_header
    _
  $region3: #{chess_evaluator.1} parent=0 // loop_header
    %s13 = sphi 0, %s17
    %p14 = scmp.ge.s32.totalorder %s13, 18
    %s21 = sphi 0, %s21
    %s23 = sphi 0, %s21
    %s24 = sphi 0, %s23
    %s38 = sphi 0, %s24
    %s42 = sphi 0, %s42
    %s44 = sphi 0, %s42
    %s45 = sphi 0, %s44
    %s59 = sphi 0, %s45
    %s65 = sphi 0, %s67
    %s68 = sphi 0, %s65
    %s69 = sphi 0, %s68
    %s85 = sphi 0, %s69
    %s89 = sphi 0, %s89
    %s91 = sphi 0, %s89
    %s92 = sphi 0, %s91
    %s106 = sphi 0, %s92
    %s110 = sphi 0, %s110
    %s112 = sphi 0, %s110
    %s113 = sphi 0, %s112
    %s127 = sphi 0, %s113
    %s131 = sphi 0, %s131
    %s133 = sphi 0, %s131
    %s134 = sphi 0, %s133
    %s148 = sphi 0, %s134
    %s152 = sphi 0, %s152
    %s154 = sphi 0, %s152
    %s155 = sphi 0, %s154
    %s169 = sphi 0, %s155
    %s173 = sphi 0, %s173
    %s175 = sphi 0, %s173
    %s176 = sphi 0, %s175
    %s190 = sphi 0, %s176
  $region4: #{chess_evaluator.1} parent=0 // loop_header_branch
    %16 = sbr.rel (%p14) target = $region8
  $region5: #{chess_evaluator.1} parent=0 // loop_body
    %s18 = ssub.s32 %s13, 1
    %s19 = ssub.s32 %s13, 2
    %s20 = sadd.s32 %s13, 1
    %s22 = sadd.s32 %s21, 1
    %p25 = scmp.eq.s32.totalorder %s13, 15
    %p26 = scmp.ne.s32.totalorder %s21, %s23
    %p27 = scmp.eq.s32.totalorder %s13, 0
    %p28 = por %p26, %p27
    %p29 = scmp.ne.s32.totalorder %s21, %s23
    %p30 = scmp.eq.s32.totalorder %s18, 15
    %p31 = por %p29, %p30
    %p32 = scmp.ne.s32.totalorder %s23, %s24
    %p33 = scmp.eq.s32.totalorder %s18, 0
    %p34 = por %p32, %p33
    %p35 = scmp.ne.s32.totalorder %s23, %s24
    %p36 = scmp.eq.s32.totalorder %s19, 15
    %p37 = por %p35, %p36
    %p39 = scmp.ne.s32.totalorder %s24, %s38
    %p40 = scmp.eq.s32.totalorder %s19, 0
    %p41 = por %p39, %p40
    %s43 = sadd.s32 %s42, 1
    %p46 = scmp.eq.s32.totalorder %s13, 15
    %p47 = scmp.ne.s32.totalorder %s42, %s44
    %p48 = scmp.eq.s32.totalorder %s13, 0
    %p49 = por %p47, %p48
    %p50 = scmp.ne.s32.totalorder %s42, %s44
    %p51 = scmp.eq.s32.totalorder %s18, 15
    %p52 = por %p50, %p51
    %p53 = scmp.ne.s32.totalorder %s44, %s45
    %p54 = scmp.eq.s32.totalorder %s18, 0
    %p55 = por %p53, %p54
    %p56 = scmp.ne.s32.totalorder %s44, %s45
    %p57 = scmp.eq.s32.totalorder %s19, 15
    %p58 = por %p56, %p57
    %p60 = scmp.ne.s32.totalorder %s45, %s59
    %p61 = scmp.eq.s32.totalorder %s19, 0
    %p62 = por %p60, %p61
    %s63 = ssub.s32 %s13, %s20
    %p64 = scmp.eq.s32.totalorder %s63, 0
    %s66 = sadd.s32 %s65, 1
    %s67 = scalar_select %p64, %s65, %s66
    %p70 = pneg %p64
    %p71 = scmp.eq.s32.totalorder %s13, 15
    %p72 = por %p70, %p71
    %p73 = scmp.ne.s32.totalorder %s65, %s68
    %p74 = scmp.eq.s32.totalorder %s13, 0
    %p75 = por %p73, %p74
    %p76 = scmp.ne.s32.totalorder %s65, %s68
    %p77 = scmp.eq.s32.totalorder %s18, 15
    %p78 = por %p76, %p77
    %p79 = scmp.ne.s32.totalorder %s68, %s69
    %p80 = scmp.eq.s32.totalorder %s18, 0
    %p81 = por %p79, %p80
    %p82 = scmp.ne.s32.totalorder %s68, %s69
    %p83 = scmp.eq.s32.totalorder %s19, 15
    %p84 = por %p82, %p83
    %p86 = scmp.ne.s32.totalorder %s69, %s85
    %p87 = scmp.eq.s32.totalorder %s19, 0
    %p88 = por %p86, %p87
    %s90 = sadd.s32 %s89, 1
    %p93 = scmp.eq.s32.totalorder %s13, 15
    %p94 = scmp.ne.s32.totalorder %s89, %s91
    %p95 = scmp.eq.s32.totalorder %s13, 0
    %p96 = por %p94, %p95
    %p97 = scmp.ne.s32.totalorder %s89, %s91
    %p98 = scmp.eq.s32.totalorder %s18, 15
    %p99 = por %p97, %p98
    %p100 = scmp.ne.s32.totalorder %s91, %s92
    %p101 = scmp.eq.s32.totalorder %s18, 0
    %p102 = por %p100, %p101
    %p103 = scmp.ne.s32.totalorder %s91, %s92
    %p104 = scmp.eq.s32.totalorder %s19, 15
    %p105 = por %p103, %p104
    %p107 = scmp.ne.s32.totalorder %s92, %s106
    %p108 = scmp.eq.s32.totalorder %s19, 0
    %p109 = por %p107, %p108
    %s111 = sadd.s32 %s110, 1
    %p114 = scmp.eq.s32.totalorder %s13, 15
    %p115 = scmp.ne.s32.totalorder %s110, %s112
    %p116 = scmp.eq.s32.totalorder %s13, 0
    %p117 = por %p115, %p116
    %p118 = scmp.ne.s32.totalorder %s110, %s112
    %p119 = scmp.eq.s32.totalorder %s18, 15
    %p120 = por %p118, %p119
    %p121 = scmp.ne.s32.totalorder %s112, %s113
    %p122 = scmp.eq.s32.totalorder %s18, 0
    %p123 = por %p121, %p122
    %p124 = scmp.ne.s32.totalorder %s112, %s113
    %p125 = scmp.eq.s32.totalorder %s19, 15
    %p126 = por %p124, %p125
    %p128 = scmp.ne.s32.totalorder %s113, %s127
    %p129 = scmp.eq.s32.totalorder %s19, 0
    %p130 = por %p128, %p129
    %s132 = sadd.s32 %s131, 1
    %p135 = scmp.eq.s32.totalorder %s13, 15
    %p136 = scmp.ne.s32.totalorder %s131, %s133
    %p137 = scmp.eq.s32.totalorder %s13, 0
    %p138 = por %p136, %p137
    %p139 = scmp.ne.s32.totalorder %s131, %s133
    %p140 = scmp.eq.s32.totalorder %s18, 15
    %p141 = por %p139, %p140
    %p142 = scmp.ne.s32.totalorder %s133, %s134
    %p143 = scmp.eq.s32.totalorder %s18, 0
    %p144 = por %p142, %p143
    %p145 = scmp.ne.s32.totalorder %s133, %s134
    %p146 = scmp.eq.s32.totalorder %s19, 15
    %p147 = por %p145, %p146
    %p149 = scmp.ne.s32.totalorder %s134, %s148
    %p150 = scmp.eq.s32.totalorder %s19, 0
    %p151 = por %p149, %p150
    %s153 = sadd.s32 %s152, 1
    %p156 = scmp.eq.s32.totalorder %s13, 15
    %p157 = scmp.ne.s32.totalorder %s152, %s154
    %p158 = scmp.eq.s32.totalorder %s13, 0
    %p159 = por %p157, %p158
    %p160 = scmp.ne.s32.totalorder %s152, %s154
    %p161 = scmp.eq.s32.totalorder %s18, 15
    %p162 = por %p160, %p161
    %p163 = scmp.ne.s32.totalorder %s154, %s155
    %p164 = scmp.eq.s32.totalorder %s18, 0
    %p165 = por %p163, %p164
    %p166 = scmp.ne.s32.totalorder %s154, %s155
    %p167 = scmp.eq.s32.totalorder %s19, 15
    %p168 = por %p166, %p167
    %p170 = scmp.ne.s32.totalorder %s155, %s169
    %p171 = scmp.eq.s32.totalorder %s19, 0
    %p172 = por %p170, %p171
    %s174 = sadd.s32 %s173, 1
    %p177 = scmp.eq.s32.totalorder %s13, 15
    %p178 = scmp.ne.s32.totalorder %s173, %s175
    %p179 = scmp.eq.s32.totalorder %s13, 0
    %p180 = por %p178, %p179
    %p181 = scmp.ne.s32.totalorder %s173, %s175
    %p182 = scmp.eq.s32.totalorder %s18, 15
    %p183 = por %p181, %p182
    %p184 = scmp.ne.s32.totalorder %s175, %s176
    %p185 = scmp.eq.s32.totalorder %s18, 0
    %p186 = por %p184, %p185
    %p187 = scmp.ne.s32.totalorder %s175, %s176
    %p188 = scmp.eq.s32.totalorder %s19, 15
    %p189 = por %p187, %p188
    %p191 = scmp.ne.s32.totalorder %s176, %s190
    %p192 = scmp.eq.s32.totalorder %s19, 0
    %p193 = por %p191, %p192
    %p194 = scmp.le.s32.totalorder 1, %s13
    %p195 = scmp.lt.s32.totalorder %s13, 17
    %p196 = pnand %p194, %p195
    %p197 = pneg %p196
    // Predicated region
    $region9: #{chess_evaluator.1} parent=5 // pred_check
      _
    $region10: #{chess_evaluator.1} parent=5 // pred_check_branch
      %199 = sbr.rel (%p196) target = $region12
    $region11: #{chess_evaluator.1} parent=5 // pred_region
      %s200 = ssub.s32 %s13, 1
      // Predicated region
      $region13: #{chess_evaluator.1} parent=11 // pred_check
        %p201 = pneg %p34
      $region14: #{chess_evaluator.1} parent=11 // pred_check_branch
        %203 = sbr.rel (%p201) target = $region16
      $region15: #{chess_evaluator.1} parent=11 // pred_region
        _
      $region16: #{chess_evaluator.1} parent=11 // pred_fallthru
        _
      // Predicated region
      $region17: #{chess_evaluator.1} parent=11 // pred_check
        %p204 = pneg %p55
      $region18: #{chess_evaluator.1} parent=11 // pred_check_branch
        %206 = sbr.rel (%p204) target = $region20
      $region19: #{chess_evaluator.1} parent=11 // pred_region
        _
      $region20: #{chess_evaluator.1} parent=11 // pred_fallthru
        _
      // Predicated region
      $region21: #{chess_evaluator.1} parent=11 // pred_check
        %p207 = pneg %p102
      $region22: #{chess_evaluator.1} parent=11 // pred_check_branch
        %209 = sbr.rel (%p207) target = $region24
      $region23: #{chess_evaluator.1} parent=11 // pred_region
        _
      $region24: #{chess_evaluator.1} parent=11 // pred_fallthru
        _
      // Predicated region
      $region25: #{chess_evaluator.1} parent=11 // pred_check
        %p210 = pneg %p123
      $region26: #{chess_evaluator.1} parent=11 // pred_check_branch
        %212 = sbr.rel (%p210) target = $region28
      $region27: #{chess_evaluator.1} parent=11 // pred_region
        _
      $region28: #{chess_evaluator.1} parent=11 // pred_fallthru
        _
      // Predicated region
      $region29: #{chess_evaluator.1} parent=11 // pred_check
        %p213 = pneg %p144
      $region30: #{chess_evaluator.1} parent=11 // pred_check_branch
        %215 = sbr.rel (%p213) target = $region32
      $region31: #{chess_evaluator.1} parent=11 // pred_region
        _
      $region32: #{chess_evaluator.1} parent=11 // pred_fallthru
        _
      // Predicated region
      $region33: #{chess_evaluator.1} parent=11 // pred_check
        %p216 = pneg %p165
      $region34: #{chess_evaluator.1} parent=11 // pred_check_branch
        %218 = sbr.rel (%p216) target = $region36
      $region35: #{chess_evaluator.1} parent=11 // pred_region
        _
      $region36: #{chess_evaluator.1} parent=11 // pred_fallthru
        _
    $region12: #{chess_evaluator.1} parent=5 // pred_fallthru
      _
    %p219 = scmp.lt.s32.totalorder %s13, 16
    // Predicated region
    $region37: #{chess_evaluator.1} parent=5 // pred_check
      %p220 = pneg %p219
    $region38: #{chess_evaluator.1} parent=5 // pred_check_branch
      %222 = sbr.rel (%p220) target = $region40
    $region39: #{chess_evaluator.1} parent=5 // pred_region
      // Predicated region
      $region41: #{chess_evaluator.1} parent=39 // pred_check
        %p223 = pneg %p75
      $region42: #{chess_evaluator.1} parent=39 // pred_check_branch
        %225 = sbr.rel (%p223) target = $region44
      $region43: #{chess_evaluator.1} parent=39 // pred_region
        %p226 = scmp.lt.s32.totalorder %s13, 15
        %s227 = scalar_select %p226, %s13, 15
        %s228 = smul.addr %s227, 128
        %s229 = smul.addr %s228, 4
        %s230 = scalar_lea.vmem %s2, %s229
      $region44: #{chess_evaluator.1} parent=39 // pred_fallthru
        _
    $region40: #{chess_evaluator.1} parent=5 // pred_fallthru
      _
    %p231 = scmp.le.s32.totalorder 1, %s13
    %p232 = scmp.lt.s32.totalorder %s13, 17
    %p233 = pnand %p231, %p232
    %p234 = pneg %p233
    // Predicated region
    $region45: #{chess_evaluator.1} parent=5 // pred_check
      _
    $region46: #{chess_evaluator.1} parent=5 // pred_check_branch
      %236 = sbr.rel (%p233) target = $region48
    $region47: #{chess_evaluator.1} parent=5 // pred_region
      %s237 = ssub.s32 %s13, 1
      %p238 = pneg %p34
      %p239 = pneg %p31
      %p240 = pneg %p55
      %p241 = pneg %p52
      %p242 = scmp.lt.s32.totalorder %s18, 15
      %s243 = scalar_select %p242, %s18, 15
      %s244 = smul.addr %s243, 128
      %s245 = smul.addr %s244, 4
      %s246 = scalar_lea.vmem %s2, %s245
      %p247 = pneg %p81
      %p248 = pneg %p78
      %p249 = pneg %p102
      %p250 = pneg %p99
      %p251 = pneg %p123
      %p252 = pneg %p120
      %p253 = pneg %p144
      %p254 = pneg %p141
      %p255 = pneg %p165
      %p256 = pneg %p162
      %p257 = pneg %p186
      %p258 = pneg %p183
      %p259 = scmp.lt.s32.totalorder %s18, 15
      %s260 = scalar_select %p259, %s18, 15
      %s261 = smul.addr %s260, 128
      %s262 = smul.addr %s261, 4
      %s263 = scalar_lea.vmem %s2, %s262
      %p264 = scmp.eq.s32.totalorder %s18, 0
      // Predicated region
      $region49: #{chess_evaluator.1} parent=47 // pred_check
        %p265 = pneg %p264
      $region50: #{chess_evaluator.1} parent=47 // pred_check_branch
        %267 = sbr.rel (%p265) target = $region52
      $region51: #{chess_evaluator.1} parent=47 // pred_region
        %s268 = scalar_lea.vmem %s6, 7
        %v269 = vld [vmem:[%s268] ss:$8 sm:$0x3]
        %v270 = vld [vmem:[%s0] sm:$0xff]
        %v271 = vld [vmem:[%s0 + $0x8] sm:$0xff]
        %v272 = vld [vmem:[%s0 + $0x10] sm:$0xff]
        %v273 = vld [vmem:[%s0 + $0x18] sm:$0xff]
        %v274 = vld [vmem:[%s0 + $0x20] sm:$0xff]
        %v275 = vld [vmem:[%s0 + $0x28] sm:$0xff]
        %v276 = vld [vmem:[%s0 + $0x30] sm:$0xff]
        %v277 = vld [vmem:[%s0 + $0x38] sm:$0xff]
        %v278 = vld [vmem:[%s0 + $0x40] sm:$0xff]
        %v279 = vld [vmem:[%s0 + $0x48] sm:$0xff]
        %v280 = vld [vmem:[%s0 + $0x50] sm:$0xff]
        %v281 = vld [vmem:[%s0 + $0x58] sm:$0xff]
        %v282 = vld [vmem:[%s0 + $0x60] sm:$0xff]
        %v283 = vld [vmem:[%s0 + $0x68] sm:$0xff]
        %v284 = vld [vmem:[%s0 + $0x70] sm:$0xff]
        %v285 = vld [vmem:[%s0 + $0x78] sm:$0xff]
        %v286 = vld [vmem:[%s0 + $0x80] sm:$0xff]
        %v287 = vld [vmem:[%s0 + $0x88] sm:$0xff]
        %v288 = vld [vmem:[%s0 + $0x90] sm:$0xff]
        %v289 = vld [vmem:[%s0 + $0x98] sm:$0xff]
        %v290 = vld [vmem:[%s0 + $0xa0] sm:$0xff]
        %v291 = vld [vmem:[%s0 + $0xa8] sm:$0xff]
        %v292 = vld [vmem:[%s0 + $0xb0] sm:$0xff]
        %v293 = vld [vmem:[%s0 + $0xb8] sm:$0xff]
        %v294 = vld [vmem:[%s0 + $0xc0] sm:$0xff]
        %v295 = vld [vmem:[%s0 + $0xc8] sm:$0xff]
        %v296 = vld [vmem:[%s0 + $0xd0] sm:$0xff]
        %v297 = vld [vmem:[%s0 + $0xd8] sm:$0xff]
        %v298 = vld [vmem:[%s0 + $0xe0] sm:$0xff]
        %v299 = vld [vmem:[%s0 + $0xe8] sm:$0xff]
        %v300 = vld [vmem:[%s0 + $0xf0] sm:$0xff]
        %v301 = vld [vmem:[%s0 + $0xf8] sm:$0xff]
        %v302 = vld [vmem:[%s0 + $0x100] sm:$0xff]
        %v303 = vld [vmem:[%s0 + $0x108] sm:$0xff]
        %v304 = vld [vmem:[%s0 + $0x110] sm:$0xff]
        %v305 = vld [vmem:[%s0 + $0x118] sm:$0xff]
        %v306 = vld [vmem:[%s0 + $0x120] sm:$0xff]
        %v307 = vld [vmem:[%s0 + $0x128] sm:$0xff]
        %v308 = vld [vmem:[%s0 + $0x130] sm:$0xff]
        %v309 = vld [vmem:[%s0 + $0x138] sm:$0xff]
        %v310 = vld [vmem:[%s0 + $0x140] sm:$0xff]
        %v311 = vld [vmem:[%s0 + $0x148] sm:$0xff]
        %v312 = vld [vmem:[%s0 + $0x150] sm:$0xff]
        %v313 = vld [vmem:[%s0 + $0x158] sm:$0xff]
        %v314 = vld [vmem:[%s0 + $0x160] sm:$0xff]
        %v315 = vld [vmem:[%s0 + $0x168] sm:$0xff]
        %v316 = vld [vmem:[%s0 + $0x170] sm:$0xff]
        %v317 = vld [vmem:[%s0 + $0x178] sm:$0xff]
        %v318 = vld [vmem:[%s0 + $0x180] sm:$0xff]
        %v319 = vld [vmem:[%s0 + $0x188] sm:$0xff]
        %v320 = vld [vmem:[%s0 + $0x190] sm:$0xff]
        %v321 = vld [vmem:[%s0 + $0x198] sm:$0xff]
        %v322 = vld [vmem:[%s0 + $0x1a0] sm:$0xff]
        %v323 = vld [vmem:[%s0 + $0x1a8] sm:$0xff]
        %v324 = vld [vmem:[%s0 + $0x1b0] sm:$0xff]
        %v325 = vld [vmem:[%s0 + $0x1b8] sm:$0xff]
        %v326 = vld [vmem:[%s0 + $0x1c0] sm:$0xff]
        %v327 = vld [vmem:[%s0 + $0x1c8] sm:$0xff]
        %v328 = vld [vmem:[%s0 + $0x1d0] sm:$0xff]
        %v329 = vld [vmem:[%s0 + $0x1d8] sm:$0xff]
        %v330 = vld [vmem:[%s0 + $0x1e0] sm:$0xff]
        %v331 = vld [vmem:[%s0 + $0x1e8] sm:$0xff]
        %v332 = vld [vmem:[%s0 + $0x1f0] sm:$0xff]
        %v333 = vld [vmem:[%s0 + $0x1f8] sm:$0xff]
        %v334 = vld [vmem:[%s1] sm:$0xff]
        %v335 = vld [vmem:[%s1 + $0x8] sm:$0xff]
        %v336 = vld [vmem:[%s1 + $0x10] sm:$0xff]
        %v337 = vld [vmem:[%s1 + $0x18] sm:$0xff]
        %v338 = vld [vmem:[%s1 + $0x20] sm:$0xff]
        %v339 = vld [vmem:[%s1 + $0x28] sm:$0xff]
        %v340 = vld [vmem:[%s1 + $0x30] sm:$0xff]
        %v341 = vld [vmem:[%s1 + $0x38] sm:$0xff]
        %v342 = vld [vmem:[%s1 + $0x40] sm:$0xff]
        %v343 = vld [vmem:[%s1 + $0x48] sm:$0xff]
        %v344 = vld [vmem:[%s1 + $0x50] sm:$0xff]
        %v345 = vld [vmem:[%s1 + $0x58] sm:$0xff]
        %v346 = vld [vmem:[%s1 + $0x60] sm:$0xff]
        %v347 = vld [vmem:[%s1 + $0x68] sm:$0xff]
        %v348 = vld [vmem:[%s1 + $0x70] sm:$0xff]
        %v349 = vld [vmem:[%s1 + $0x78] sm:$0xff]
        %v350 = vld [vmem:[%s1 + $0x80] sm:$0xff]
        %v351 = vld [vmem:[%s1 + $0x88] sm:$0xff]
        %v352 = vld [vmem:[%s1 + $0x90] sm:$0xff]
        %v353 = vld [vmem:[%s1 + $0x98] sm:$0xff]
        %v354 = vld [vmem:[%s1 + $0xa0] sm:$0xff]
        %v355 = vld [vmem:[%s1 + $0xa8] sm:$0xff]
        %v356 = vld [vmem:[%s1 + $0xb0] sm:$0xff]
        %v357 = vld [vmem:[%s1 + $0xb8] sm:$0xff]
        %v358 = vld [vmem:[%s1 + $0xc0] sm:$0xff]
        %v359 = vld [vmem:[%s1 + $0xc8] sm:$0xff]
        %v360 = vld [vmem:[%s1 + $0xd0] sm:$0xff]
        %v361 = vld [vmem:[%s1 + $0xd8] sm:$0xff]
        %v362 = vld [vmem:[%s1 + $0xe0] sm:$0xff]
        %v363 = vld [vmem:[%s1 + $0xe8] sm:$0xff]
        %v364 = vld [vmem:[%s1 + $0xf0] sm:$0xff]
        %v365 = vld [vmem:[%s1 + $0xf8] sm:$0xff]
        %v367 = vperm.slane %v269, 0
        %v368 = vperm.slane %v269, 1
        %v435 = vunpack.c.l.b16 %v270
        %v436 = vunpack.c.h.b16 %v270
        %v437 = vunpack.c.l.b16 %v271
        %v438 = vunpack.c.h.b16 %v271
        %v439 = vunpack.c.l.b16 %v272
        %v440 = vunpack.c.h.b16 %v272
        %v441 = vunpack.c.l.b16 %v273
        %v442 = vunpack.c.h.b16 %v273
        %v443 = vunpack.c.l.b16 %v274
        %v444 = vunpack.c.h.b16 %v274
        %v445 = vunpack.c.l.b16 %v275
        %v446 = vunpack.c.h.b16 %v275
        %v447 = vunpack.c.l.b16 %v276
        %v448 = vunpack.c.h.b16 %v276
        %v449 = vunpack.c.l.b16 %v277
        %v450 = vunpack.c.h.b16 %v277
        %v451 = vunpack.c.l.b16 %v278
        %v452 = vunpack.c.h.b16 %v278
        %v453 = vunpack.c.l.b16 %v279
        %v454 = vunpack.c.h.b16 %v279
        %v455 = vunpack.c.l.b16 %v280
        %v456 = vunpack.c.h.b16 %v280
        %v457 = vunpack.c.l.b16 %v281
        %v458 = vunpack.c.h.b16 %v281
        %v459 = vunpack.c.l.b16 %v282
        %v460 = vunpack.c.h.b16 %v282
        %v461 = vunpack.c.l.b16 %v283
        %v462 = vunpack.c.h.b16 %v283
        %v463 = vunpack.c.l.b16 %v284
        %v464 = vunpack.c.h.b16 %v284
        %v465 = vunpack.c.l.b16 %v285
        %v466 = vunpack.c.h.b16 %v285
        %v467 = vunpack.c.l.b16 %v286
        %v468 = vunpack.c.h.b16 %v286
        %v469 = vunpack.c.l.b16 %v287
        %v470 = vunpack.c.h.b16 %v287
        %v471 = vunpack.c.l.b16 %v288
        %v472 = vunpack.c.h.b16 %v288
        %v473 = vunpack.c.l.b16 %v289
        %v474 = vunpack.c.h.b16 %v289
        %v475 = vunpack.c.l.b16 %v290
        %v476 = vunpack.c.h.b16 %v290
        %v477 = vunpack.c.l.b16 %v291
        %v478 = vunpack.c.h.b16 %v291
        %v479 = vunpack.c.l.b16 %v292
        %v480 = vunpack.c.h.b16 %v292
        %v481 = vunpack.c.l.b16 %v293
        %v482 = vunpack.c.h.b16 %v293
        %v483 = vunpack.c.l.b16 %v294
        %v484 = vunpack.c.h.b16 %v294
        %v485 = vunpack.c.l.b16 %v295
        %v486 = vunpack.c.h.b16 %v295
        %v487 = vunpack.c.l.b16 %v296
        %v488 = vunpack.c.h.b16 %v296
        %v489 = vunpack.c.l.b16 %v297
        %v490 = vunpack.c.h.b16 %v297
        %v491 = vunpack.c.l.b16 %v298
        %v492 = vunpack.c.h.b16 %v298
        %v493 = vunpack.c.l.b16 %v299
        %v494 = vunpack.c.h.b16 %v299
        %v495 = vunpack.c.l.b16 %v300
        %v496 = vunpack.c.h.b16 %v300
        %v497 = vunpack.c.l.b16 %v301
        %v498 = vunpack.c.h.b16 %v301
        %v499 = vunpack.c.l.b16 %v302
        %v500 = vunpack.c.h.b16 %v302
        %v501 = vunpack.c.l.b16 %v303
        %v502 = vunpack.c.h.b16 %v303
        %v503 = vunpack.c.l.b16 %v304
        %v504 = vunpack.c.h.b16 %v304
        %v505 = vunpack.c.l.b16 %v305
        %v506 = vunpack.c.h.b16 %v305
        %v507 = vunpack.c.l.b16 %v306
        %v508 = vunpack.c.h.b16 %v306
        %v509 = vunpack.c.l.b16 %v307
        %v510 = vunpack.c.h.b16 %v307
        %v511 = vunpack.c.l.b16 %v308
        %v512 = vunpack.c.h.b16 %v308
        %v513 = vunpack.c.l.b16 %v309
        %v514 = vunpack.c.h.b16 %v309
        %v515 = vunpack.c.l.b16 %v310
        %v516 = vunpack.c.h.b16 %v310
        %v517 = vunpack.c.l.b16 %v311
        %v518 = vunpack.c.h.b16 %v311
        %v519 = vunpack.c.l.b16 %v312
        %v520 = vunpack.c.h.b16 %v312
        %v521 = vunpack.c.l.b16 %v313
        %v522 = vunpack.c.h.b16 %v313
        %v523 = vunpack.c.l.b16 %v314
        %v524 = vunpack.c.h.b16 %v314
        %v525 = vunpack.c.l.b16 %v315
        %v526 = vunpack.c.h.b16 %v315
        %v527 = vunpack.c.l.b16 %v316
        %v528 = vunpack.c.h.b16 %v316
        %v529 = vunpack.c.l.b16 %v317
        %v530 = vunpack.c.h.b16 %v317
        %v531 = vunpack.c.l.b16 %v318
        %v532 = vunpack.c.h.b16 %v318
        %v533 = vunpack.c.l.b16 %v319
        %v534 = vunpack.c.h.b16 %v319
        %v535 = vunpack.c.l.b16 %v320
        %v536 = vunpack.c.h.b16 %v320
        %v537 = vunpack.c.l.b16 %v321
        %v538 = vunpack.c.h.b16 %v321
        %v539 = vunpack.c.l.b16 %v322
        %v540 = vunpack.c.h.b16 %v322
        %v541 = vunpack.c.l.b16 %v323
        %v542 = vunpack.c.h.b16 %v323
        %v543 = vunpack.c.l.b16 %v324
        %v544 = vunpack.c.h.b16 %v324
        %v545 = vunpack.c.l.b16 %v325
        %v546 = vunpack.c.h.b16 %v325
        %v547 = vunpack.c.l.b16 %v326
        %v548 = vunpack.c.h.b16 %v326
        %v549 = vunpack.c.l.b16 %v327
        %v550 = vunpack.c.h.b16 %v327
        %v551 = vunpack.c.l.b16 %v328
        %v552 = vunpack.c.h.b16 %v328
        %v553 = vunpack.c.l.b16 %v329
        %v554 = vunpack.c.h.b16 %v329
        %v555 = vunpack.c.l.b16 %v330
        %v556 = vunpack.c.h.b16 %v330
        %v557 = vunpack.c.l.b16 %v331
        %v558 = vunpack.c.h.b16 %v331
        %v559 = vunpack.c.l.b16 %v332
        %v560 = vunpack.c.h.b16 %v332
        %v561 = vunpack.c.l.b16 %v333
        %v562 = vunpack.c.h.b16 %v333
        %v563 = vpack.c.b16 %v437, %v435
        %v564 = vpack.c.b16 %v438, %v436
        %v565 = vpack.c.b16 %v441, %v439
        %v566 = vpack.c.b16 %v442, %v440
        %v567 = vpack.c.b16 %v445, %v443
        %v568 = vpack.c.b16 %v446, %v444
        %v569 = vpack.c.b16 %v449, %v447
        %v570 = vpack.c.b16 %v450, %v448
        %v571 = vpack.c.b16 %v453, %v451
        %v572 = vpack.c.b16 %v454, %v452
        %v573 = vpack.c.b16 %v457, %v455
        %v574 = vpack.c.b16 %v458, %v456
        %v575 = vpack.c.b16 %v461, %v459
        %v576 = vpack.c.b16 %v462, %v460
        %v577 = vpack.c.b16 %v465, %v463
        %v578 = vpack.c.b16 %v466, %v464
        %v579 = vpack.c.b16 %v469, %v467
        %v580 = vpack.c.b16 %v470, %v468
        %v581 = vpack.c.b16 %v473, %v471
        %v582 = vpack.c.b16 %v474, %v472
        %v583 = vpack.c.b16 %v477, %v475
        %v584 = vpack.c.b16 %v478, %v476
        %v585 = vpack.c.b16 %v481, %v479
        %v586 = vpack.c.b16 %v482, %v480
        %v587 = vpack.c.b16 %v485, %v483
        %v588 = vpack.c.b16 %v486, %v484
        %v589 = vpack.c.b16 %v489, %v487
        %v590 = vpack.c.b16 %v490, %v488
        %v591 = vpack.c.b16 %v493, %v491
        %v592 = vpack.c.b16 %v494, %v492
        %v593 = vpack.c.b16 %v497, %v495
        %v594 = vpack.c.b16 %v498, %v496
        %v595 = vpack.c.b16 %v501, %v499
        %v596 = vpack.c.b16 %v502, %v500
        %v597 = vpack.c.b16 %v505, %v503
        %v598 = vpack.c.b16 %v506, %v504
        %v599 = vpack.c.b16 %v509, %v507
        %v600 = vpack.c.b16 %v510, %v508
        %v601 = vpack.c.b16 %v513, %v511
        %v602 = vpack.c.b16 %v514, %v512
        %v603 = vpack.c.b16 %v517, %v515
        %v604 = vpack.c.b16 %v518, %v516
        %v605 = vpack.c.b16 %v521, %v519
        %v606 = vpack.c.b16 %v522, %v520
        %v607 = vpack.c.b16 %v525, %v523
        %v608 = vpack.c.b16 %v526, %v524
        %v609 = vpack.c.b16 %v529, %v527
        %v610 = vpack.c.b16 %v530, %v528
        %v611 = vpack.c.b16 %v533, %v531
        %v612 = vpack.c.b16 %v534, %v532
        %v613 = vpack.c.b16 %v537, %v535
        %v614 = vpack.c.b16 %v538, %v536
        %v615 = vpack.c.b16 %v541, %v539
        %v616 = vpack.c.b16 %v542, %v540
        %v617 = vpack.c.b16 %v545, %v543
        %v618 = vpack.c.b16 %v546, %v544
        %v619 = vpack.c.b16 %v549, %v547
        %v620 = vpack.c.b16 %v550, %v548
        %v621 = vpack.c.b16 %v553, %v551
        %v622 = vpack.c.b16 %v554, %v552
        %v623 = vpack.c.b16 %v557, %v555
        %v624 = vpack.c.b16 %v558, %v556
        %v625 = vpack.c.b16 %v561, %v559
        %v626 = vpack.c.b16 %v562, %v560
        %v723 = vunpack.c.l.b16 %v334
        %v724 = vunpack.c.h.b16 %v334
        %v725 = vunpack.c.l.b16 %v335
        %v726 = vunpack.c.h.b16 %v335
        %v727 = vunpack.c.l.b16 %v336
        %v728 = vunpack.c.h.b16 %v336
        %v729 = vunpack.c.l.b16 %v337
        %v730 = vunpack.c.h.b16 %v337
        %v731 = vunpack.c.l.b16 %v338
        %v732 = vunpack.c.h.b16 %v338
        %v733 = vunpack.c.l.b16 %v339
        %v734 = vunpack.c.h.b16 %v339
        %v735 = vunpack.c.l.b16 %v340
        %v736 = vunpack.c.h.b16 %v340
        %v737 = vunpack.c.l.b16 %v341
        %v738 = vunpack.c.h.b16 %v341
        %v739 = vunpack.c.l.b16 %v342
        %v740 = vunpack.c.h.b16 %v342
        %v741 = vunpack.c.l.b16 %v343
        %v742 = vunpack.c.h.b16 %v343
        %v743 = vunpack.c.l.b16 %v344
        %v744 = vunpack.c.h.b16 %v344
        %v745 = vunpack.c.l.b16 %v345
        %v746 = vunpack.c.h.b16 %v345
        %v747 = vunpack.c.l.b16 %v346
        %v748 = vunpack.c.h.b16 %v346
        %v749 = vunpack.c.l.b16 %v347
        %v750 = vunpack.c.h.b16 %v347
        %v751 = vunpack.c.l.b16 %v348
        %v752 = vunpack.c.h.b16 %v348
        %v753 = vunpack.c.l.b16 %v349
        %v754 = vunpack.c.h.b16 %v349
        %v755 = vunpack.c.l.b16 %v350
        %v756 = vunpack.c.h.b16 %v350
        %v757 = vunpack.c.l.b16 %v351
        %v758 = vunpack.c.h.b16 %v351
        %v759 = vunpack.c.l.b16 %v352
        %v760 = vunpack.c.h.b16 %v352
        %v761 = vunpack.c.l.b16 %v353
        %v762 = vunpack.c.h.b16 %v353
        %v763 = vunpack.c.l.b16 %v354
        %v764 = vunpack.c.h.b16 %v354
        %v765 = vunpack.c.l.b16 %v355
        %v766 = vunpack.c.h.b16 %v355
        %v767 = vunpack.c.l.b16 %v356
        %v768 = vunpack.c.h.b16 %v356
        %v769 = vunpack.c.l.b16 %v357
        %v770 = vunpack.c.h.b16 %v357
        %v771 = vunpack.c.l.b16 %v358
        %v772 = vunpack.c.h.b16 %v358
        %v773 = vunpack.c.l.b16 %v359
        %v774 = vunpack.c.h.b16 %v359
        %v775 = vunpack.c.l.b16 %v360
        %v776 = vunpack.c.h.b16 %v360
        %v777 = vunpack.c.l.b16 %v361
        %v778 = vunpack.c.h.b16 %v361
        %v779 = vunpack.c.l.b16 %v362
        %v780 = vunpack.c.h.b16 %v362
        %v781 = vunpack.c.l.b16 %v363
        %v782 = vunpack.c.h.b16 %v363
        %v783 = vunpack.c.l.b16 %v364
        %v784 = vunpack.c.h.b16 %v364
        %v785 = vunpack.c.l.b16 %v365
        %v786 = vunpack.c.h.b16 %v365
        %v787 = vpack.c.b16 %v725, %v723
        %v788 = vpack.c.b16 %v726, %v724
        %v789 = vpack.c.b16 %v729, %v727
        %v790 = vpack.c.b16 %v730, %v728
        %v791 = vpack.c.b16 %v733, %v731
        %v792 = vpack.c.b16 %v734, %v732
        %v793 = vpack.c.b16 %v737, %v735
        %v794 = vpack.c.b16 %v738, %v736
        %v795 = vpack.c.b16 %v741, %v739
        %v796 = vpack.c.b16 %v742, %v740
        %v797 = vpack.c.b16 %v745, %v743
        %v798 = vpack.c.b16 %v746, %v744
        %v799 = vpack.c.b16 %v749, %v747
        %v800 = vpack.c.b16 %v750, %v748
        %v801 = vpack.c.b16 %v753, %v751
        %v802 = vpack.c.b16 %v754, %v752
        %v803 = vpack.c.b16 %v757, %v755
        %v804 = vpack.c.b16 %v758, %v756
        %v805 = vpack.c.b16 %v761, %v759
        %v806 = vpack.c.b16 %v762, %v760
        %v807 = vpack.c.b16 %v765, %v763
        %v808 = vpack.c.b16 %v766, %v764
        %v809 = vpack.c.b16 %v769, %v767
        %v810 = vpack.c.b16 %v770, %v768
        %v811 = vpack.c.b16 %v773, %v771
        %v812 = vpack.c.b16 %v774, %v772
        %v813 = vpack.c.b16 %v777, %v775
        %v814 = vpack.c.b16 %v778, %v776
        %v815 = vpack.c.b16 %v781, %v779
        %v816 = vpack.c.b16 %v782, %v780
        %v817 = vpack.c.b16 %v785, %v783
        %v818 = vpack.c.b16 %v786, %v784
        %851 = vmatpush.bf16.msra.mxu0 %v801
        %852 = vmatpush.bf16.msra.mxu0 %v799
        %853 = vmatpush.bf16.msra.mxu0 %v797
        %854 = vmatpush.bf16.msra.mxu0 %v795
        %855 = vmatpush.bf16.msra.mxu0 %v793
        %856 = vmatpush.bf16.msra.mxu0 %v791
        %857 = vmatpush.bf16.msra.mxu0 %v789
        %858 = vmatpush.bf16.msra.mxu0 %v787
        %859 = vmatmul.bf16.gmra.mxu0 %v563
        %v860 = vpop.f32.mrf.mxu0
        %v861 = vadd.f32 %v367, %v860
        %v862 = vpop.f32.mrf.mxu0
        %v863 = vadd.f32 %v367, %v862
        %864 = vmatmul.bf16.gmra.mxu0 %v565
        %v865 = vpop.f32.mrf.mxu0
        %v866 = vadd.f32 %v367, %v865
        %v867 = vpop.f32.mrf.mxu0
        %v868 = vadd.f32 %v367, %v867
        %869 = vmatmul.bf16.gmra.mxu0 %v567
        %v870 = vpop.f32.mrf.mxu0
        %v871 = vadd.f32 %v367, %v870
        %v872 = vpop.f32.mrf.mxu0
        %v873 = vadd.f32 %v367, %v872
        %874 = vmatmul.bf16.gmra.mxu0 %v569
        %v875 = vpop.f32.mrf.mxu0
        %v876 = vadd.f32 %v367, %v875
        %v877 = vpop.f32.mrf.mxu0
        %v878 = vadd.f32 %v367, %v877
        %879 = vmatmul.bf16.gmra.mxu0 %v571
        %v880 = vpop.f32.mrf.mxu0
        %v881 = vadd.f32 %v367, %v880
        %v882 = vpop.f32.mrf.mxu0
        %v883 = vadd.f32 %v367, %v882
        %884 = vmatmul.bf16.gmra.mxu0 %v573
        %v885 = vpop.f32.mrf.mxu0
        %v886 = vadd.f32 %v367, %v885
        %v887 = vpop.f32.mrf.mxu0
        %v888 = vadd.f32 %v367, %v887
        %889 = vmatmul.bf16.gmra.mxu0 %v575
        %v890 = vpop.f32.mrf.mxu0
        %v891 = vadd.f32 %v367, %v890
        %v892 = vpop.f32.mrf.mxu0
        %v893 = vadd.f32 %v367, %v892
        %894 = vmatmul.bf16.gmra.mxu0 %v577
        %v895 = vpop.f32.mrf.mxu0
        %v896 = vadd.f32 %v367, %v895
        %v897 = vpop.f32.mrf.mxu0
        %v898 = vadd.f32 %v367, %v897
        %899 = vmatmul.bf16.gmra.mxu0 %v579
        %v900 = vpop.f32.mrf.mxu0
        %v901 = vadd.f32 %v367, %v900
        %v902 = vpop.f32.mrf.mxu0
        %v903 = vadd.f32 %v367, %v902
        %904 = vmatmul.bf16.gmra.mxu0 %v581
        %v905 = vpop.f32.mrf.mxu0
        %v906 = vadd.f32 %v367, %v905
        %v907 = vpop.f32.mrf.mxu0
        %v908 = vadd.f32 %v367, %v907
        %909 = vmatmul.bf16.gmra.mxu0 %v583
        %v910 = vpop.f32.mrf.mxu0
        %v911 = vadd.f32 %v367, %v910
        %v912 = vpop.f32.mrf.mxu0
        %v913 = vadd.f32 %v367, %v912
        %914 = vmatmul.bf16.gmra.mxu0 %v585
        %v915 = vpop.f32.mrf.mxu0
        %v916 = vadd.f32 %v367, %v915
        %v917 = vpop.f32.mrf.mxu0
        %v918 = vadd.f32 %v367, %v917
        %919 = vmatmul.bf16.gmra.mxu0 %v587
        %v920 = vpop.f32.mrf.mxu0
        %v921 = vadd.f32 %v367, %v920
        %v922 = vpop.f32.mrf.mxu0
        %v923 = vadd.f32 %v367, %v922
        %924 = vmatmul.bf16.gmra.mxu0 %v589
        %v925 = vpop.f32.mrf.mxu0
        %v926 = vadd.f32 %v367, %v925
        %v927 = vpop.f32.mrf.mxu0
        %v928 = vadd.f32 %v367, %v927
        %929 = vmatmul.bf16.gmra.mxu0 %v591
        %v930 = vpop.f32.mrf.mxu0
        %v931 = vadd.f32 %v367, %v930
        %v932 = vpop.f32.mrf.mxu0
        %v933 = vadd.f32 %v367, %v932
        %934 = vmatmul.bf16.gmra.mxu0 %v593
        %v935 = vpop.f32.mrf.mxu0
        %v936 = vadd.f32 %v367, %v935
        %v937 = vpop.f32.mrf.mxu0
        %v938 = vadd.f32 %v367, %v937
        %939 = vmatmul.bf16.gmra.mxu0 %v595
        %v940 = vpop.f32.mrf.mxu0
        %v941 = vadd.f32 %v367, %v940
        %v942 = vpop.f32.mrf.mxu0
        %v943 = vadd.f32 %v367, %v942
        %944 = vmatmul.bf16.gmra.mxu0 %v597
        %v945 = vpop.f32.mrf.mxu0
        %v946 = vadd.f32 %v367, %v945
        %v947 = vpop.f32.mrf.mxu0
        %v948 = vadd.f32 %v367, %v947
        %949 = vmatmul.bf16.gmra.mxu0 %v599
        %v950 = vpop.f32.mrf.mxu0
        %v951 = vadd.f32 %v367, %v950
        %v952 = vpop.f32.mrf.mxu0
        %v953 = vadd.f32 %v367, %v952
        %954 = vmatmul.bf16.gmra.mxu0 %v601
        %v955 = vpop.f32.mrf.mxu0
        %v956 = vadd.f32 %v367, %v955
        %v957 = vpop.f32.mrf.mxu0
        %v958 = vadd.f32 %v367, %v957
        %959 = vmatmul.bf16.gmra.mxu0 %v603
        %v960 = vpop.f32.mrf.mxu0
        %v961 = vadd.f32 %v367, %v960
        %v962 = vpop.f32.mrf.mxu0
        %v963 = vadd.f32 %v367, %v962
        %964 = vmatmul.bf16.gmra.mxu0 %v605
        %v965 = vpop.f32.mrf.mxu0
        %v966 = vadd.f32 %v367, %v965
        %v967 = vpop.f32.mrf.mxu0
        %v968 = vadd.f32 %v367, %v967
        %969 = vmatmul.bf16.gmra.mxu0 %v607
        %v970 = vpop.f32.mrf.mxu0
        %v971 = vadd.f32 %v367, %v970
        %v972 = vpop.f32.mrf.mxu0
        %v973 = vadd.f32 %v367, %v972
        %974 = vmatmul.bf16.gmra.mxu0 %v609
        %v975 = vpop.f32.mrf.mxu0
        %v976 = vadd.f32 %v367, %v975
        %v977 = vpop.f32.mrf.mxu0
        %v978 = vadd.f32 %v367, %v977
        %979 = vmatmul.bf16.gmra.mxu0 %v611
        %v980 = vpop.f32.mrf.mxu0
        %v981 = vadd.f32 %v367, %v980
        %v982 = vpop.f32.mrf.mxu0
        %v983 = vadd.f32 %v367, %v982
        %984 = vmatmul.bf16.gmra.mxu0 %v613
        %v985 = vpop.f32.mrf.mxu0
        %v986 = vadd.f32 %v367, %v985
        %v987 = vpop.f32.mrf.mxu0
        %v988 = vadd.f32 %v367, %v987
        %989 = vmatmul.bf16.gmra.mxu0 %v615
        %v990 = vpop.f32.mrf.mxu0
        %v991 = vadd.f32 %v367, %v990
        %v992 = vpop.f32.mrf.mxu0
        %v993 = vadd.f32 %v367, %v992
        %994 = vmatmul.bf16.gmra.mxu0 %v617
        %v995 = vpop.f32.mrf.mxu0
        %v996 = vadd.f32 %v367, %v995
        %v997 = vpop.f32.mrf.mxu0
        %v998 = vadd.f32 %v367, %v997
        %999 = vmatmul.bf16.gmra.mxu0 %v619
        %v1000 = vpop.f32.mrf.mxu0
        %v1001 = vadd.f32 %v367, %v1000
        %v1002 = vpop.f32.mrf.mxu0
        %v1003 = vadd.f32 %v367, %v1002
        %1004 = vmatmul.bf16.gmra.mxu0 %v621
        %v1005 = vpop.f32.mrf.mxu0
        %v1006 = vadd.f32 %v367, %v1005
        %v1007 = vpop.f32.mrf.mxu0
        %v1008 = vadd.f32 %v367, %v1007
        %1009 = vmatmul.bf16.gmra.mxu0 %v623
        %v1010 = vpop.f32.mrf.mxu0
        %v1011 = vadd.f32 %v367, %v1010
        %v1012 = vpop.f32.mrf.mxu0
        %v1013 = vadd.f32 %v367, %v1012
        %1014 = vmatmul.bf16.gmra.mxu0 %v625
        %v1015 = vpop.f32.mrf.mxu0
        %v1016 = vadd.f32 %v367, %v1015
        %v1017 = vpop.f32.mrf.mxu0
        %v1018 = vadd.f32 %v367, %v1017
        %1019 = vdwg.mxu0
        %1020 = vmatpush.bf16.msra.mxu0 %v817
        %1021 = vmatpush.bf16.msra.mxu0 %v815
        %1022 = vmatpush.bf16.msra.mxu0 %v813
        %1023 = vmatpush.bf16.msra.mxu0 %v811
        %1024 = vmatpush.bf16.msra.mxu0 %v809
        %1025 = vmatpush.bf16.msra.mxu0 %v807
        %1026 = vmatpush.bf16.msra.mxu0 %v805
        %1027 = vmatpush.bf16.msra.mxu0 %v803
        %1028 = vmatmul.bf16.gmra.mxu0 %v564
        %v1029 = vpop.f32.mrf.mxu0
        %v1030 = vadd.f32 %v861, %v1029
        %v1031 = vpop.f32.mrf.mxu0
        %v1032 = vadd.f32 %v863, %v1031
        %1033 = vmatmul.bf16.gmra.mxu0 %v566
        %v1034 = vpop.f32.mrf.mxu0
        %v1035 = vadd.f32 %v866, %v1034
        %v1036 = vpop.f32.mrf.mxu0
        %v1037 = vadd.f32 %v868, %v1036
        %1038 = vmatmul.bf16.gmra.mxu0 %v568
        %v1039 = vpop.f32.mrf.mxu0
        %v1040 = vadd.f32 %v871, %v1039
        %v1041 = vpop.f32.mrf.mxu0
        %v1042 = vadd.f32 %v873, %v1041
        %1043 = vmatmul.bf16.gmra.mxu0 %v570
        %v1044 = vpop.f32.mrf.mxu0
        %v1045 = vadd.f32 %v876, %v1044
        %v1046 = vpop.f32.mrf.mxu0
        %v1047 = vadd.f32 %v878, %v1046
        %1048 = vmatmul.bf16.gmra.mxu0 %v572
        %v1049 = vpop.f32.mrf.mxu0
        %v1050 = vadd.f32 %v881, %v1049
        %v1051 = vpop.f32.mrf.mxu0
        %v1052 = vadd.f32 %v883, %v1051
        %1053 = vmatmul.bf16.gmra.mxu0 %v574
        %v1054 = vpop.f32.mrf.mxu0
        %v1055 = vadd.f32 %v886, %v1054
        %v1056 = vpop.f32.mrf.mxu0
        %v1057 = vadd.f32 %v888, %v1056
        %1058 = vmatmul.bf16.gmra.mxu0 %v576
        %v1059 = vpop.f32.mrf.mxu0
        %v1060 = vadd.f32 %v891, %v1059
        %v1061 = vpop.f32.mrf.mxu0
        %v1062 = vadd.f32 %v893, %v1061
        %1063 = vmatmul.bf16.gmra.mxu0 %v578
        %v1064 = vpop.f32.mrf.mxu0
        %v1065 = vadd.f32 %v896, %v1064
        %v1066 = vpop.f32.mrf.mxu0
        %v1067 = vadd.f32 %v898, %v1066
        %1068 = vmatmul.bf16.gmra.mxu0 %v580
        %v1069 = vpop.f32.mrf.mxu0
        %v1070 = vadd.f32 %v901, %v1069
        %v1071 = vpop.f32.mrf.mxu0
        %v1072 = vadd.f32 %v903, %v1071
        %1073 = vmatmul.bf16.gmra.mxu0 %v582
        %v1074 = vpop.f32.mrf.mxu0
        %v1075 = vadd.f32 %v906, %v1074
        %v1076 = vpop.f32.mrf.mxu0
        %v1077 = vadd.f32 %v908, %v1076
        %1078 = vmatmul.bf16.gmra.mxu0 %v584
        %v1079 = vpop.f32.mrf.mxu0
        %v1080 = vadd.f32 %v911, %v1079
        %v1081 = vpop.f32.mrf.mxu0
        %v1082 = vadd.f32 %v913, %v1081
        %1083 = vmatmul.bf16.gmra.mxu0 %v586
        %v1084 = vpop.f32.mrf.mxu0
        %v1085 = vadd.f32 %v916, %v1084
        %v1086 = vpop.f32.mrf.mxu0
        %v1087 = vadd.f32 %v918, %v1086
        %1088 = vmatmul.bf16.gmra.mxu0 %v588
        %v1089 = vpop.f32.mrf.mxu0
        %v1090 = vadd.f32 %v921, %v1089
        %v1091 = vpop.f32.mrf.mxu0
        %v1092 = vadd.f32 %v923, %v1091
        %1093 = vmatmul.bf16.gmra.mxu0 %v590
        %v1094 = vpop.f32.mrf.mxu0
        %v1095 = vadd.f32 %v926, %v1094
        %v1096 = vpop.f32.mrf.mxu0
        %v1097 = vadd.f32 %v928, %v1096
        %1098 = vmatmul.bf16.gmra.mxu0 %v592
        %v1099 = vpop.f32.mrf.mxu0
        %v1100 = vadd.f32 %v931, %v1099
        %v1101 = vpop.f32.mrf.mxu0
        %v1102 = vadd.f32 %v933, %v1101
        %1103 = vmatmul.bf16.gmra.mxu0 %v594
        %v1104 = vpop.f32.mrf.mxu0
        %v1105 = vadd.f32 %v936, %v1104
        %v1106 = vpop.f32.mrf.mxu0
        %v1107 = vadd.f32 %v938, %v1106
        %1108 = vmatmul.bf16.gmra.mxu0 %v596
        %v1109 = vpop.f32.mrf.mxu0
        %v1110 = vadd.f32 %v941, %v1109
        %v1111 = vpop.f32.mrf.mxu0
        %v1112 = vadd.f32 %v943, %v1111
        %1113 = vmatmul.bf16.gmra.mxu0 %v598
        %v1114 = vpop.f32.mrf.mxu0
        %v1115 = vadd.f32 %v946, %v1114
        %v1116 = vpop.f32.mrf.mxu0
        %v1117 = vadd.f32 %v948, %v1116
        %1118 = vmatmul.bf16.gmra.mxu0 %v600
        %v1119 = vpop.f32.mrf.mxu0
        %v1120 = vadd.f32 %v951, %v1119
        %v1121 = vpop.f32.mrf.mxu0
        %v1122 = vadd.f32 %v953, %v1121
        %1123 = vmatmul.bf16.gmra.mxu0 %v602
        %v1124 = vpop.f32.mrf.mxu0
        %v1125 = vadd.f32 %v956, %v1124
        %v1126 = vpop.f32.mrf.mxu0
        %v1127 = vadd.f32 %v958, %v1126
        %1128 = vmatmul.bf16.gmra.mxu0 %v604
        %v1129 = vpop.f32.mrf.mxu0
        %v1130 = vadd.f32 %v961, %v1129
        %v1131 = vpop.f32.mrf.mxu0
        %v1132 = vadd.f32 %v963, %v1131
        %1133 = vmatmul.bf16.gmra.mxu0 %v606
        %v1134 = vpop.f32.mrf.mxu0
        %v1135 = vadd.f32 %v966, %v1134
        %v1136 = vpop.f32.mrf.mxu0
        %v1137 = vadd.f32 %v968, %v1136
        %1138 = vmatmul.bf16.gmra.mxu0 %v608
        %v1139 = vpop.f32.mrf.mxu0
        %v1140 = vadd.f32 %v971, %v1139
        %v1141 = vpop.f32.mrf.mxu0
        %v1142 = vadd.f32 %v973, %v1141
        %1143 = vmatmul.bf16.gmra.mxu0 %v610
        %v1144 = vpop.f32.mrf.mxu0
        %v1145 = vadd.f32 %v976, %v1144
        %v1146 = vpop.f32.mrf.mxu0
        %v1147 = vadd.f32 %v978, %v1146
        %1148 = vmatmul.bf16.gmra.mxu0 %v612
        %v1149 = vpop.f32.mrf.mxu0
        %v1150 = vadd.f32 %v981, %v1149
        %v1151 = vpop.f32.mrf.mxu0
        %v1152 = vadd.f32 %v983, %v1151
        %1153 = vmatmul.bf16.gmra.mxu0 %v614
        %v1154 = vpop.f32.mrf.mxu0
        %v1155 = vadd.f32 %v986, %v1154
        %v1156 = vpop.f32.mrf.mxu0
        %v1157 = vadd.f32 %v988, %v1156
        %1158 = vmatmul.bf16.gmra.mxu0 %v616
        %v1159 = vpop.f32.mrf.mxu0
        %v1160 = vadd.f32 %v991, %v1159
        %v1161 = vpop.f32.mrf.mxu0
        %v1162 = vadd.f32 %v993, %v1161
        %1163 = vmatmul.bf16.gmra.mxu0 %v618
        %v1164 = vpop.f32.mrf.mxu0
        %v1165 = vadd.f32 %v996, %v1164
        %v1166 = vpop.f32.mrf.mxu0
        %v1167 = vadd.f32 %v998, %v1166
        %1168 = vmatmul.bf16.gmra.mxu0 %v620
        %v1169 = vpop.f32.mrf.mxu0
        %v1170 = vadd.f32 %v1001, %v1169
        %v1171 = vpop.f32.mrf.mxu0
        %v1172 = vadd.f32 %v1003, %v1171
        %1173 = vmatmul.bf16.gmra.mxu0 %v622
        %v1174 = vpop.f32.mrf.mxu0
        %v1175 = vadd.f32 %v1006, %v1174
        %v1176 = vpop.f32.mrf.mxu0
        %v1177 = vadd.f32 %v1008, %v1176
        %1178 = vmatmul.bf16.gmra.mxu0 %v624
        %v1179 = vpop.f32.mrf.mxu0
        %v1180 = vadd.f32 %v1011, %v1179
        %v1181 = vpop.f32.mrf.mxu0
        %v1182 = vadd.f32 %v1013, %v1181
        %1183 = vmatmul.bf16.gmra.mxu0 %v626
        %v1184 = vpop.f32.mrf.mxu0
        %v1185 = vadd.f32 %v1016, %v1184
        %v1186 = vpop.f32.mrf.mxu0
        %v1187 = vadd.f32 %v1018, %v1186
        %1188 = vdwg.mxu0
        %1189 = vmatpush.bf16.msra.mxu0 %v802
        %1190 = vmatpush.bf16.msra.mxu0 %v800
        %1191 = vmatpush.bf16.msra.mxu0 %v798
        %1192 = vmatpush.bf16.msra.mxu0 %v796
        %1193 = vmatpush.bf16.msra.mxu0 %v794
        %1194 = vmatpush.bf16.msra.mxu0 %v792
        %1195 = vmatpush.bf16.msra.mxu0 %v790
        %1196 = vmatpush.bf16.msra.mxu0 %v788
        %1197 = vmatmul.bf16.gmra.mxu0 %v563
        %v1198 = vpop.f32.mrf.mxu0
        %v1199 = vadd.f32 %v368, %v1198
        %v1200 = vpop.f32.mrf.mxu0
        %v1201 = vadd.f32 %v368, %v1200
        %1202 = vmatmul.bf16.gmra.mxu0 %v565
        %v1203 = vpop.f32.mrf.mxu0
        %v1204 = vadd.f32 %v368, %v1203
        %v1205 = vpop.f32.mrf.mxu0
        %v1206 = vadd.f32 %v368, %v1205
        %1207 = vmatmul.bf16.gmra.mxu0 %v567
        %v1208 = vpop.f32.mrf.mxu0
        %v1209 = vadd.f32 %v368, %v1208
        %v1210 = vpop.f32.mrf.mxu0
        %v1211 = vadd.f32 %v368, %v1210
        %1212 = vmatmul.bf16.gmra.mxu0 %v569
        %v1213 = vpop.f32.mrf.mxu0
        %v1214 = vadd.f32 %v368, %v1213
        %v1215 = vpop.f32.mrf.mxu0
        %v1216 = vadd.f32 %v368, %v1215
        %1217 = vmatmul.bf16.gmra.mxu0 %v571
        %v1218 = vpop.f32.mrf.mxu0
        %v1219 = vadd.f32 %v368, %v1218
        %v1220 = vpop.f32.mrf.mxu0
        %v1221 = vadd.f32 %v368, %v1220
        %1222 = vmatmul.bf16.gmra.mxu0 %v573
        %v1223 = vpop.f32.mrf.mxu0
        %v1224 = vadd.f32 %v368, %v1223
        %v1225 = vpop.f32.mrf.mxu0
        %v1226 = vadd.f32 %v368, %v1225
        %1227 = vmatmul.bf16.gmra.mxu0 %v575
        %v1228 = vpop.f32.mrf.mxu0
        %v1229 = vadd.f32 %v368, %v1228
        %v1230 = vpop.f32.mrf.mxu0
        %v1231 = vadd.f32 %v368, %v1230
        %1232 = vmatmul.bf16.gmra.mxu0 %v577
        %v1233 = vpop.f32.mrf.mxu0
        %v1234 = vadd.f32 %v368, %v1233
        %v1235 = vpop.f32.mrf.mxu0
        %v1236 = vadd.f32 %v368, %v1235
        %1237 = vmatmul.bf16.gmra.mxu0 %v579
        %v1238 = vpop.f32.mrf.mxu0
        %v1239 = vadd.f32 %v368, %v1238
        %v1240 = vpop.f32.mrf.mxu0
        %v1241 = vadd.f32 %v368, %v1240
        %1242 = vmatmul.bf16.gmra.mxu0 %v581
        %v1243 = vpop.f32.mrf.mxu0
        %v1244 = vadd.f32 %v368, %v1243
        %v1245 = vpop.f32.mrf.mxu0
        %v1246 = vadd.f32 %v368, %v1245
        %1247 = vmatmul.bf16.gmra.mxu0 %v583
        %v1248 = vpop.f32.mrf.mxu0
        %v1249 = vadd.f32 %v368, %v1248
        %v1250 = vpop.f32.mrf.mxu0
        %v1251 = vadd.f32 %v368, %v1250
        %1252 = vmatmul.bf16.gmra.mxu0 %v585
        %v1253 = vpop.f32.mrf.mxu0
        %v1254 = vadd.f32 %v368, %v1253
        %v1255 = vpop.f32.mrf.mxu0
        %v1256 = vadd.f32 %v368, %v1255
        %1257 = vmatmul.bf16.gmra.mxu0 %v587
        %v1258 = vpop.f32.mrf.mxu0
        %v1259 = vadd.f32 %v368, %v1258
        %v1260 = vpop.f32.mrf.mxu0
        %v1261 = vadd.f32 %v368, %v1260
        %1262 = vmatmul.bf16.gmra.mxu0 %v589
        %v1263 = vpop.f32.mrf.mxu0
        %v1264 = vadd.f32 %v368, %v1263
        %v1265 = vpop.f32.mrf.mxu0
        %v1266 = vadd.f32 %v368, %v1265
        %1267 = vmatmul.bf16.gmra.mxu0 %v591
        %v1268 = vpop.f32.mrf.mxu0
        %v1269 = vadd.f32 %v368, %v1268
        %v1270 = vpop.f32.mrf.mxu0
        %v1271 = vadd.f32 %v368, %v1270
        %1272 = vmatmul.bf16.gmra.mxu0 %v593
        %v1273 = vpop.f32.mrf.mxu0
        %v1274 = vadd.f32 %v368, %v1273
        %v1275 = vpop.f32.mrf.mxu0
        %v1276 = vadd.f32 %v368, %v1275
        %1277 = vmatmul.bf16.gmra.mxu0 %v595
        %v1278 = vpop.f32.mrf.mxu0
        %v1279 = vadd.f32 %v368, %v1278
        %v1280 = vpop.f32.mrf.mxu0
        %v1281 = vadd.f32 %v368, %v1280
        %1282 = vmatmul.bf16.gmra.mxu0 %v597
        %v1283 = vpop.f32.mrf.mxu0
        %v1284 = vadd.f32 %v368, %v1283
        %v1285 = vpop.f32.mrf.mxu0
        %v1286 = vadd.f32 %v368, %v1285
        %1287 = vmatmul.bf16.gmra.mxu0 %v599
        %v1288 = vpop.f32.mrf.mxu0
        %v1289 = vadd.f32 %v368, %v1288
        %v1290 = vpop.f32.mrf.mxu0
        %v1291 = vadd.f32 %v368, %v1290
        %1292 = vmatmul.bf16.gmra.mxu0 %v601
        %v1293 = vpop.f32.mrf.mxu0
        %v1294 = vadd.f32 %v368, %v1293
        %v1295 = vpop.f32.mrf.mxu0
        %v1296 = vadd.f32 %v368, %v1295
        %1297 = vmatmul.bf16.gmra.mxu0 %v603
        %v1298 = vpop.f32.mrf.mxu0
        %v1299 = vadd.f32 %v368, %v1298
        %v1300 = vpop.f32.mrf.mxu0
        %v1301 = vadd.f32 %v368, %v1300
        %1302 = vmatmul.bf16.gmra.mxu0 %v605
        %v1303 = vpop.f32.mrf.mxu0
        %v1304 = vadd.f32 %v368, %v1303
        %v1305 = vpop.f32.mrf.mxu0
        %v1306 = vadd.f32 %v368, %v1305
        %1307 = vmatmul.bf16.gmra.mxu0 %v607
        %v1308 = vpop.f32.mrf.mxu0
        %v1309 = vadd.f32 %v368, %v1308
        %v1310 = vpop.f32.mrf.mxu0
        %v1311 = vadd.f32 %v368, %v1310
        %1312 = vmatmul.bf16.gmra.mxu0 %v609
        %v1313 = vpop.f32.mrf.mxu0
        %v1314 = vadd.f32 %v368, %v1313
        %v1315 = vpop.f32.mrf.mxu0
        %v1316 = vadd.f32 %v368, %v1315
        %1317 = vmatmul.bf16.gmra.mxu0 %v611
        %v1318 = vpop.f32.mrf.mxu0
        %v1319 = vadd.f32 %v368, %v1318
        %v1320 = vpop.f32.mrf.mxu0
        %v1321 = vadd.f32 %v368, %v1320
        %1322 = vmatmul.bf16.gmra.mxu0 %v613
        %v1323 = vpop.f32.mrf.mxu0
        %v1324 = vadd.f32 %v368, %v1323
        %v1325 = vpop.f32.mrf.mxu0
        %v1326 = vadd.f32 %v368, %v1325
        %1327 = vmatmul.bf16.gmra.mxu0 %v615
        %v1328 = vpop.f32.mrf.mxu0
        %v1329 = vadd.f32 %v368, %v1328
        %v1330 = vpop.f32.mrf.mxu0
        %v1331 = vadd.f32 %v368, %v1330
        %1332 = vmatmul.bf16.gmra.mxu0 %v617
        %v1333 = vpop.f32.mrf.mxu0
        %v1334 = vadd.f32 %v368, %v1333
        %v1335 = vpop.f32.mrf.mxu0
        %v1336 = vadd.f32 %v368, %v1335
        %1337 = vmatmul.bf16.gmra.mxu0 %v619
        %v1338 = vpop.f32.mrf.mxu0
        %v1339 = vadd.f32 %v368, %v1338
        %v1340 = vpop.f32.mrf.mxu0
        %v1341 = vadd.f32 %v368, %v1340
        %1342 = vmatmul.bf16.gmra.mxu0 %v621
        %v1343 = vpop.f32.mrf.mxu0
        %v1344 = vadd.f32 %v368, %v1343
        %v1345 = vpop.f32.mrf.mxu0
        %v1346 = vadd.f32 %v368, %v1345
        %1347 = vmatmul.bf16.gmra.mxu0 %v623
        %v1348 = vpop.f32.mrf.mxu0
        %v1349 = vadd.f32 %v368, %v1348
        %v1350 = vpop.f32.mrf.mxu0
        %v1351 = vadd.f32 %v368, %v1350
        %1352 = vmatmul.bf16.gmra.mxu0 %v625
        %v1353 = vpop.f32.mrf.mxu0
        %v1354 = vadd.f32 %v368, %v1353
        %v1355 = vpop.f32.mrf.mxu0
        %v1356 = vadd.f32 %v368, %v1355
        %1357 = vdwg.mxu0
        %1358 = vmatpush.bf16.msra.mxu0 %v818
        %1359 = vmatpush.bf16.msra.mxu0 %v816
        %1360 = vmatpush.bf16.msra.mxu0 %v814
        %1361 = vmatpush.bf16.msra.mxu0 %v812
        %1362 = vmatpush.bf16.msra.mxu0 %v810
        %1363 = vmatpush.bf16.msra.mxu0 %v808
        %1364 = vmatpush.bf16.msra.mxu0 %v806
        %1365 = vmatpush.bf16.msra.mxu0 %v804
        %1366 = vmatmul.bf16.gmra.mxu0 %v564
        %v1367 = vpop.f32.mrf.mxu0
        %v1368 = vadd.f32 %v1199, %v1367
        %v1369 = vpop.f32.mrf.mxu0
        %v1370 = vadd.f32 %v1201, %v1369
        %1371 = vmatmul.bf16.gmra.mxu0 %v566
        %v1372 = vpop.f32.mrf.mxu0
        %v1373 = vadd.f32 %v1204, %v1372
        %v1374 = vpop.f32.mrf.mxu0
        %v1375 = vadd.f32 %v1206, %v1374
        %1376 = vmatmul.bf16.gmra.mxu0 %v568
        %v1377 = vpop.f32.mrf.mxu0
        %v1378 = vadd.f32 %v1209, %v1377
        %v1379 = vpop.f32.mrf.mxu0
        %v1380 = vadd.f32 %v1211, %v1379
        %1381 = vmatmul.bf16.gmra.mxu0 %v570
        %v1382 = vpop.f32.mrf.mxu0
        %v1383 = vadd.f32 %v1214, %v1382
        %v1384 = vpop.f32.mrf.mxu0
        %v1385 = vadd.f32 %v1216, %v1384
        %1386 = vmatmul.bf16.gmra.mxu0 %v572
        %v1387 = vpop.f32.mrf.mxu0
        %v1388 = vadd.f32 %v1219, %v1387
        %v1389 = vpop.f32.mrf.mxu0
        %v1390 = vadd.f32 %v1221, %v1389
        %1391 = vmatmul.bf16.gmra.mxu0 %v574
        %v1392 = vpop.f32.mrf.mxu0
        %v1393 = vadd.f32 %v1224, %v1392
        %v1394 = vpop.f32.mrf.mxu0
        %v1395 = vadd.f32 %v1226, %v1394
        %1396 = vmatmul.bf16.gmra.mxu0 %v576
        %v1397 = vpop.f32.mrf.mxu0
        %v1398 = vadd.f32 %v1229, %v1397
        %v1399 = vpop.f32.mrf.mxu0
        %v1400 = vadd.f32 %v1231, %v1399
        %1401 = vmatmul.bf16.gmra.mxu0 %v578
        %v1402 = vpop.f32.mrf.mxu0
        %v1403 = vadd.f32 %v1234, %v1402
        %v1404 = vpop.f32.mrf.mxu0
        %v1405 = vadd.f32 %v1236, %v1404
        %1406 = vmatmul.bf16.gmra.mxu0 %v580
        %v1407 = vpop.f32.mrf.mxu0
        %v1408 = vadd.f32 %v1239, %v1407
        %v1409 = vpop.f32.mrf.mxu0
        %v1410 = vadd.f32 %v1241, %v1409
        %1411 = vmatmul.bf16.gmra.mxu0 %v582
        %v1412 = vpop.f32.mrf.mxu0
        %v1413 = vadd.f32 %v1244, %v1412
        %v1414 = vpop.f32.mrf.mxu0
        %v1415 = vadd.f32 %v1246, %v1414
        %1416 = vmatmul.bf16.gmra.mxu0 %v584
        %v1417 = vpop.f32.mrf.mxu0
        %v1418 = vadd.f32 %v1249, %v1417
        %v1419 = vpop.f32.mrf.mxu0
        %v1420 = vadd.f32 %v1251, %v1419
        %1421 = vmatmul.bf16.gmra.mxu0 %v586
        %v1422 = vpop.f32.mrf.mxu0
        %v1423 = vadd.f32 %v1254, %v1422
        %v1424 = vpop.f32.mrf.mxu0
        %v1425 = vadd.f32 %v1256, %v1424
        %1426 = vmatmul.bf16.gmra.mxu0 %v588
        %v1427 = vpop.f32.mrf.mxu0
        %v1428 = vadd.f32 %v1259, %v1427
        %v1429 = vpop.f32.mrf.mxu0
        %v1430 = vadd.f32 %v1261, %v1429
        %1431 = vmatmul.bf16.gmra.mxu0 %v590
        %v1432 = vpop.f32.mrf.mxu0
        %v1433 = vadd.f32 %v1264, %v1432
        %v1434 = vpop.f32.mrf.mxu0
        %v1435 = vadd.f32 %v1266, %v1434
        %1436 = vmatmul.bf16.gmra.mxu0 %v592
        %v1437 = vpop.f32.mrf.mxu0
        %v1438 = vadd.f32 %v1269, %v1437
        %v1439 = vpop.f32.mrf.mxu0
        %v1440 = vadd.f32 %v1271, %v1439
        %1441 = vmatmul.bf16.gmra.mxu0 %v594
        %v1442 = vpop.f32.mrf.mxu0
        %v1443 = vadd.f32 %v1274, %v1442
        %v1444 = vpop.f32.mrf.mxu0
        %v1445 = vadd.f32 %v1276, %v1444
        %1446 = vmatmul.bf16.gmra.mxu0 %v596
        %v1447 = vpop.f32.mrf.mxu0
        %v1448 = vadd.f32 %v1279, %v1447
        %v1449 = vpop.f32.mrf.mxu0
        %v1450 = vadd.f32 %v1281, %v1449
        %1451 = vmatmul.bf16.gmra.mxu0 %v598
        %v1452 = vpop.f32.mrf.mxu0
        %v1453 = vadd.f32 %v1284, %v1452
        %v1454 = vpop.f32.mrf.mxu0
        %v1455 = vadd.f32 %v1286, %v1454
        %1456 = vmatmul.bf16.gmra.mxu0 %v600
        %v1457 = vpop.f32.mrf.mxu0
        %v1458 = vadd.f32 %v1289, %v1457
        %v1459 = vpop.f32.mrf.mxu0
        %v1460 = vadd.f32 %v1291, %v1459
        %1461 = vmatmul.bf16.gmra.mxu0 %v602
        %v1462 = vpop.f32.mrf.mxu0
        %v1463 = vadd.f32 %v1294, %v1462
        %v1464 = vpop.f32.mrf.mxu0
        %v1465 = vadd.f32 %v1296, %v1464
        %1466 = vmatmul.bf16.gmra.mxu0 %v604
        %v1467 = vpop.f32.mrf.mxu0
        %v1468 = vadd.f32 %v1299, %v1467
        %v1469 = vpop.f32.mrf.mxu0
        %v1470 = vadd.f32 %v1301, %v1469
        %1471 = vmatmul.bf16.gmra.mxu0 %v606
        %v1472 = vpop.f32.mrf.mxu0
        %v1473 = vadd.f32 %v1304, %v1472
        %v1474 = vpop.f32.mrf.mxu0
        %v1475 = vadd.f32 %v1306, %v1474
        %1476 = vmatmul.bf16.gmra.mxu0 %v608
        %v1477 = vpop.f32.mrf.mxu0
        %v1478 = vadd.f32 %v1309, %v1477
        %v1479 = vpop.f32.mrf.mxu0
        %v1480 = vadd.f32 %v1311, %v1479
        %1481 = vmatmul.bf16.gmra.mxu0 %v610
        %v1482 = vpop.f32.mrf.mxu0
        %v1483 = vadd.f32 %v1314, %v1482
        %v1484 = vpop.f32.mrf.mxu0
        %v1485 = vadd.f32 %v1316, %v1484
        %1486 = vmatmul.bf16.gmra.mxu0 %v612
        %v1487 = vpop.f32.mrf.mxu0
        %v1488 = vadd.f32 %v1319, %v1487
        %v1489 = vpop.f32.mrf.mxu0
        %v1490 = vadd.f32 %v1321, %v1489
        %1491 = vmatmul.bf16.gmra.mxu0 %v614
        %v1492 = vpop.f32.mrf.mxu0
        %v1493 = vadd.f32 %v1324, %v1492
        %v1494 = vpop.f32.mrf.mxu0
        %v1495 = vadd.f32 %v1326, %v1494
        %1496 = vmatmul.bf16.gmra.mxu0 %v616
        %v1497 = vpop.f32.mrf.mxu0
        %v1498 = vadd.f32 %v1329, %v1497
        %v1499 = vpop.f32.mrf.mxu0
        %v1500 = vadd.f32 %v1331, %v1499
        %1501 = vmatmul.bf16.gmra.mxu0 %v618
        %v1502 = vpop.f32.mrf.mxu0
        %v1503 = vadd.f32 %v1334, %v1502
        %v1504 = vpop.f32.mrf.mxu0
        %v1505 = vadd.f32 %v1336, %v1504
        %1506 = vmatmul.bf16.gmra.mxu0 %v620
        %v1507 = vpop.f32.mrf.mxu0
        %v1508 = vadd.f32 %v1339, %v1507
        %v1509 = vpop.f32.mrf.mxu0
        %v1510 = vadd.f32 %v1341, %v1509
        %1511 = vmatmul.bf16.gmra.mxu0 %v622
        %v1512 = vpop.f32.mrf.mxu0
        %v1513 = vadd.f32 %v1344, %v1512
        %v1514 = vpop.f32.mrf.mxu0
        %v1515 = vadd.f32 %v1346, %v1514
        %1516 = vmatmul.bf16.gmra.mxu0 %v624
        %v1517 = vpop.f32.mrf.mxu0
        %v1518 = vadd.f32 %v1349, %v1517
        %v1519 = vpop.f32.mrf.mxu0
        %v1520 = vadd.f32 %v1351, %v1519
        %1521 = vmatmul.bf16.gmra.mxu0 %v626
        %v1522 = vpop.f32.mrf.mxu0
        %v1523 = vadd.f32 %v1354, %v1522
        %v1524 = vpop.f32.mrf.mxu0
        %v1525 = vadd.f32 %v1356, %v1524
        %1526 = vdwg.mxu0
        %v1527 = vmax.f32 %v1030, 0.0
        %v1528 = vmax.f32 %v1368, 0.0
        %v1529 = vmax.f32 %v1032, 0.0
        %v1530 = vmax.f32 %v1370, 0.0
        %v1531 = vmax.f32 %v1035, 0.0
        %v1532 = vmax.f32 %v1373, 0.0
        %v1533 = vmax.f32 %v1037, 0.0
        %v1534 = vmax.f32 %v1375, 0.0
        %v1535 = vmax.f32 %v1040, 0.0
        %v1536 = vmax.f32 %v1378, 0.0
        %v1537 = vmax.f32 %v1042, 0.0
        %v1538 = vmax.f32 %v1380, 0.0
        %v1539 = vmax.f32 %v1045, 0.0
        %v1540 = vmax.f32 %v1383, 0.0
        %v1541 = vmax.f32 %v1047, 0.0
        %v1542 = vmax.f32 %v1385, 0.0
        %v1543 = vmax.f32 %v1050, 0.0
        %v1544 = vmax.f32 %v1388, 0.0
        %v1545 = vmax.f32 %v1052, 0.0
        %v1546 = vmax.f32 %v1390, 0.0
        %v1547 = vmax.f32 %v1055, 0.0
        %v1548 = vmax.f32 %v1393, 0.0
        %v1549 = vmax.f32 %v1057, 0.0
        %v1550 = vmax.f32 %v1395, 0.0
        %v1551 = vmax.f32 %v1060, 0.0
        %v1552 = vmax.f32 %v1398, 0.0
        %v1553 = vmax.f32 %v1062, 0.0
        %v1554 = vmax.f32 %v1400, 0.0
        %v1555 = vmax.f32 %v1065, 0.0
        %v1556 = vmax.f32 %v1403, 0.0
        %v1557 = vmax.f32 %v1067, 0.0
        %v1558 = vmax.f32 %v1405, 0.0
        %v1559 = vmax.f32 %v1070, 0.0
        %v1560 = vmax.f32 %v1408, 0.0
        %v1561 = vmax.f32 %v1072, 0.0
        %v1562 = vmax.f32 %v1410, 0.0
        %v1563 = vmax.f32 %v1075, 0.0
        %v1564 = vmax.f32 %v1413, 0.0
        %v1565 = vmax.f32 %v1077, 0.0
        %v1566 = vmax.f32 %v1415, 0.0
        %v1567 = vmax.f32 %v1080, 0.0
        %v1568 = vmax.f32 %v1418, 0.0
        %v1569 = vmax.f32 %v1082, 0.0
        %v1570 = vmax.f32 %v1420, 0.0
        %v1571 = vmax.f32 %v1085, 0.0
        %v1572 = vmax.f32 %v1423, 0.0
        %v1573 = vmax.f32 %v1087, 0.0
        %v1574 = vmax.f32 %v1425, 0.0
        %v1575 = vmax.f32 %v1090, 0.0
        %v1576 = vmax.f32 %v1428, 0.0
        %v1577 = vmax.f32 %v1092, 0.0
        %v1578 = vmax.f32 %v1430, 0.0
        %v1579 = vmax.f32 %v1095, 0.0
        %v1580 = vmax.f32 %v1433, 0.0
        %v1581 = vmax.f32 %v1097, 0.0
        %v1582 = vmax.f32 %v1435, 0.0
        %v1583 = vmax.f32 %v1100, 0.0
        %v1584 = vmax.f32 %v1438, 0.0
        %v1585 = vmax.f32 %v1102, 0.0
        %v1586 = vmax.f32 %v1440, 0.0
        %v1587 = vmax.f32 %v1105, 0.0
        %v1588 = vmax.f32 %v1443, 0.0
        %v1589 = vmax.f32 %v1107, 0.0
        %v1590 = vmax.f32 %v1445, 0.0
        %v1591 = vmax.f32 %v1110, 0.0
        %v1592 = vmax.f32 %v1448, 0.0
        %v1593 = vmax.f32 %v1112, 0.0
        %v1594 = vmax.f32 %v1450, 0.0
        %v1595 = vmax.f32 %v1115, 0.0
        %v1596 = vmax.f32 %v1453, 0.0
        %v1597 = vmax.f32 %v1117, 0.0
        %v1598 = vmax.f32 %v1455, 0.0
        %v1599 = vmax.f32 %v1120, 0.0
        %v1600 = vmax.f32 %v1458, 0.0
        %v1601 = vmax.f32 %v1122, 0.0
        %v1602 = vmax.f32 %v1460, 0.0
        %v1603 = vmax.f32 %v1125, 0.0
        %v1604 = vmax.f32 %v1463, 0.0
        %v1605 = vmax.f32 %v1127, 0.0
        %v1606 = vmax.f32 %v1465, 0.0
        %v1607 = vmax.f32 %v1130, 0.0
        %v1608 = vmax.f32 %v1468, 0.0
        %v1609 = vmax.f32 %v1132, 0.0
        %v1610 = vmax.f32 %v1470, 0.0
        %v1611 = vmax.f32 %v1135, 0.0
        %v1612 = vmax.f32 %v1473, 0.0
        %v1613 = vmax.f32 %v1137, 0.0
        %v1614 = vmax.f32 %v1475, 0.0
        %v1615 = vmax.f32 %v1140, 0.0
        %v1616 = vmax.f32 %v1478, 0.0
        %v1617 = vmax.f32 %v1142, 0.0
        %v1618 = vmax.f32 %v1480, 0.0
        %v1619 = vmax.f32 %v1145, 0.0
        %v1620 = vmax.f32 %v1483, 0.0
        %v1621 = vmax.f32 %v1147, 0.0
        %v1622 = vmax.f32 %v1485, 0.0
        %v1623 = vmax.f32 %v1150, 0.0
        %v1624 = vmax.f32 %v1488, 0.0
        %v1625 = vmax.f32 %v1152, 0.0
        %v1626 = vmax.f32 %v1490, 0.0
        %v1627 = vmax.f32 %v1155, 0.0
        %v1628 = vmax.f32 %v1493, 0.0
        %v1629 = vmax.f32 %v1157, 0.0
        %v1630 = vmax.f32 %v1495, 0.0
        %v1631 = vmax.f32 %v1160, 0.0
        %v1632 = vmax.f32 %v1498, 0.0
        %v1633 = vmax.f32 %v1162, 0.0
        %v1634 = vmax.f32 %v1500, 0.0
        %v1635 = vmax.f32 %v1165, 0.0
        %v1636 = vmax.f32 %v1503, 0.0
        %v1637 = vmax.f32 %v1167, 0.0
        %v1638 = vmax.f32 %v1505, 0.0
        %v1639 = vmax.f32 %v1170, 0.0
        %v1640 = vmax.f32 %v1508, 0.0
        %v1641 = vmax.f32 %v1172, 0.0
        %v1642 = vmax.f32 %v1510, 0.0
        %v1643 = vmax.f32 %v1175, 0.0
        %v1644 = vmax.f32 %v1513, 0.0
        %v1645 = vmax.f32 %v1177, 0.0
        %v1646 = vmax.f32 %v1515, 0.0
        %v1647 = vmax.f32 %v1180, 0.0
        %v1648 = vmax.f32 %v1518, 0.0
        %v1649 = vmax.f32 %v1182, 0.0
        %v1650 = vmax.f32 %v1520, 0.0
        %v1651 = vmax.f32 %v1185, 0.0
        %v1652 = vmax.f32 %v1523, 0.0
        %v1653 = vmax.f32 %v1187, 0.0
        %v1654 = vmax.f32 %v1525, 0.0
        %v1655 = vmax.f32 %v1527, %v1559
        %v1656 = vmax.f32 %v1528, %v1560
        %v1657 = vmax.f32 %v1529, %v1561
        %v1658 = vmax.f32 %v1530, %v1562
        %v1659 = vmax.f32 %v1531, %v1563
        %v1660 = vmax.f32 %v1532, %v1564
        %v1661 = vmax.f32 %v1533, %v1565
        %v1662 = vmax.f32 %v1534, %v1566
        %v1663 = vmax.f32 %v1535, %v1567
        %v1664 = vmax.f32 %v1536, %v1568
        %v1665 = vmax.f32 %v1537, %v1569
        %v1666 = vmax.f32 %v1538, %v1570
        %v1667 = vmax.f32 %v1539, %v1571
        %v1668 = vmax.f32 %v1540, %v1572
        %v1669 = vmax.f32 %v1541, %v1573
        %v1670 = vmax.f32 %v1542, %v1574
        %v1671 = vmax.f32 %v1543, %v1575
        %v1672 = vmax.f32 %v1544, %v1576
        %v1673 = vmax.f32 %v1545, %v1577
        %v1674 = vmax.f32 %v1546, %v1578
        %v1675 = vmax.f32 %v1547, %v1579
        %v1676 = vmax.f32 %v1548, %v1580
        %v1677 = vmax.f32 %v1549, %v1581
        %v1678 = vmax.f32 %v1550, %v1582
        %v1679 = vmax.f32 %v1551, %v1583
        %v1680 = vmax.f32 %v1552, %v1584
        %v1681 = vmax.f32 %v1553, %v1585
        %v1682 = vmax.f32 %v1554, %v1586
        %v1683 = vmax.f32 %v1555, %v1587
        %v1684 = vmax.f32 %v1556, %v1588
        %v1685 = vmax.f32 %v1557, %v1589
        %v1686 = vmax.f32 %v1558, %v1590
        %v1687 = vmax.f32 %v1591, %v1623
        %v1688 = vmax.f32 %v1592, %v1624
        %v1689 = vmax.f32 %v1593, %v1625
        %v1690 = vmax.f32 %v1594, %v1626
        %v1691 = vmax.f32 %v1595, %v1627
        %v1692 = vmax.f32 %v1596, %v1628
        %v1693 = vmax.f32 %v1597, %v1629
        %v1694 = vmax.f32 %v1598, %v1630
        %v1695 = vmax.f32 %v1599, %v1631
        %v1696 = vmax.f32 %v1600, %v1632
        %v1697 = vmax.f32 %v1601, %v1633
        %v1698 = vmax.f32 %v1602, %v1634
        %v1699 = vmax.f32 %v1603, %v1635
        %v1700 = vmax.f32 %v1604, %v1636
        %v1701 = vmax.f32 %v1605, %v1637
        %v1702 = vmax.f32 %v1606, %v1638
        %v1703 = vmax.f32 %v1607, %v1639
        %v1704 = vmax.f32 %v1608, %v1640
        %v1705 = vmax.f32 %v1609, %v1641
        %v1706 = vmax.f32 %v1610, %v1642
        %v1707 = vmax.f32 %v1611, %v1643
        %v1708 = vmax.f32 %v1612, %v1644
        %v1709 = vmax.f32 %v1613, %v1645
        %v1710 = vmax.f32 %v1614, %v1646
        %v1711 = vmax.f32 %v1615, %v1647
        %v1712 = vmax.f32 %v1616, %v1648
        %v1713 = vmax.f32 %v1617, %v1649
        %v1714 = vmax.f32 %v1618, %v1650
        %v1715 = vmax.f32 %v1619, %v1651
        %v1716 = vmax.f32 %v1620, %v1652
        %v1717 = vmax.f32 %v1621, %v1653
        %v1718 = vmax.f32 %v1622, %v1654
        %v1719 = vmax.f32 %v1655, %v1687
        %v1720 = vmax.f32 %v1656, %v1688
        %v1721 = vmax.f32 %v1657, %v1689
        %v1722 = vmax.f32 %v1658, %v1690
        %v1723 = vmax.f32 %v1659, %v1691
        %v1724 = vmax.f32 %v1660, %v1692
        %v1725 = vmax.f32 %v1661, %v1693
        %v1726 = vmax.f32 %v1662, %v1694
        %v1727 = vmax.f32 %v1663, %v1695
        %v1728 = vmax.f32 %v1664, %v1696
        %v1729 = vmax.f32 %v1665, %v1697
        %v1730 = vmax.f32 %v1666, %v1698
        %v1731 = vmax.f32 %v1667, %v1699
        %v1732 = vmax.f32 %v1668, %v1700
        %v1733 = vmax.f32 %v1669, %v1701
        %v1734 = vmax.f32 %v1670, %v1702
        %v1735 = vmax.f32 %v1671, %v1703
        %v1736 = vmax.f32 %v1672, %v1704
        %v1737 = vmax.f32 %v1673, %v1705
        %v1738 = vmax.f32 %v1674, %v1706
        %v1739 = vmax.f32 %v1675, %v1707
        %v1740 = vmax.f32 %v1676, %v1708
        %v1741 = vmax.f32 %v1677, %v1709
        %v1742 = vmax.f32 %v1678, %v1710
        %v1743 = vmax.f32 %v1679, %v1711
        %v1744 = vmax.f32 %v1680, %v1712
        %v1745 = vmax.f32 %v1681, %v1713
        %v1746 = vmax.f32 %v1682, %v1714
        %v1747 = vmax.f32 %v1683, %v1715
        %v1748 = vmax.f32 %v1684, %v1716
        %v1749 = vmax.f32 %v1685, %v1717
        %v1750 = vmax.f32 %v1686, %v1718
        %1751 = vst [vmem:[#allocation2] sm:$0xff] %v1719
        %1752 = vst [vmem:[#allocation2 + $0x8] sm:$0xff] %v1720
        %1753 = vst [vmem:[#allocation2 + $0x10] sm:$0xff] %v1721
        %1754 = vst [vmem:[#allocation2 + $0x18] sm:$0xff] %v1722
        %1755 = vst [vmem:[#allocation2 + $0x20] sm:$0xff] %v1723
        %1756 = vst [vmem:[#allocation2 + $0x28] sm:$0xff] %v1724
        %1757 = vst [vmem:[#allocation2 + $0x30] sm:$0xff] %v1725
        %1758 = vst [vmem:[#allocation2 + $0x38] sm:$0xff] %v1726
        %1759 = vst [vmem:[#allocation2 + $0x40] sm:$0xff] %v1727
        %1760 = vst [vmem:[#allocation2 + $0x48] sm:$0xff] %v1728
        %1761 = vst [vmem:[#allocation2 + $0x50] sm:$0xff] %v1729
        %1762 = vst [vmem:[#allocation2 + $0x58] sm:$0xff] %v1730
        %1763 = vst [vmem:[#allocation2 + $0x60] sm:$0xff] %v1731
        %1764 = vst [vmem:[#allocation2 + $0x68] sm:$0xff] %v1732
        %1765 = vst [vmem:[#allocation2 + $0x70] sm:$0xff] %v1733
        %1766 = vst [vmem:[#allocation2 + $0x78] sm:$0xff] %v1734
        %1767 = vst [vmem:[#allocation2 + $0x80] sm:$0xff] %v1735
        %1768 = vst [vmem:[#allocation2 + $0x88] sm:$0xff] %v1736
        %1769 = vst [vmem:[#allocation2 + $0x90] sm:$0xff] %v1737
        %1770 = vst [vmem:[#allocation2 + $0x98] sm:$0xff] %v1738
        %1771 = vst [vmem:[#allocation2 + $0xa0] sm:$0xff] %v1739
        %1772 = vst [vmem:[#allocation2 + $0xa8] sm:$0xff] %v1740
        %1773 = vst [vmem:[#allocation2 + $0xb0] sm:$0xff] %v1741
        %1774 = vst [vmem:[#allocation2 + $0xb8] sm:$0xff] %v1742
        %1775 = vst [vmem:[#allocation2 + $0xc0] sm:$0xff] %v1743
        %1776 = vst [vmem:[#allocation2 + $0xc8] sm:$0xff] %v1744
        %1777 = vst [vmem:[#allocation2 + $0xd0] sm:$0xff] %v1745
        %1778 = vst [vmem:[#allocation2 + $0xd8] sm:$0xff] %v1746
        %1779 = vst [vmem:[#allocation2 + $0xe0] sm:$0xff] %v1747
        %1780 = vst [vmem:[#allocation2 + $0xe8] sm:$0xff] %v1748
        %1781 = vst [vmem:[#allocation2 + $0xf0] sm:$0xff] %v1749
        %1782 = vst [vmem:[#allocation2 + $0xf8] sm:$0xff] %v1750
        %v1783 = vld [vmem:[%s6 + $0x20] sm:$0xff]
        %v1784 = vld [vmem:[%s6] sm:$0x1f]
        %v1785 = vld [vmem:[%s6 + $0x8] sm:$0x1f]
        %v1786 = vld [vmem:[%s6 + $0x10] sm:$0x1f]
        %v1787 = vld [vmem:[%s6 + $0x18] sm:$0x1f]
        %s1788 = scalar_lea.vmem %s6, 5
        %v1789 = vld [vmem:[%s1788] ss:$8 sm:$0xf]
        %v1791 = vperm.slane %v1789, 0
        %v1792 = vperm.slane %v1789, 1
        %v1793 = vperm.slane %v1789, 2
        %v1794 = vperm.slane %v1789, 3
        %vm1799 = vcmask 39936
        %v1801 = vsel %vm1799, %v1783, 0
        %vm1803 = vcmask 1044480
        %v1805 = vsel %vm1803, %v1784, 0
        %v1808 = vsel %vm1803, %v1785, 0
        %v1811 = vsel %vm1803, %v1786, 0
        %v1814 = vsel %vm1803, %v1787, 0
        %1816 = vmatpush.msra.mxu0 0.0
        %1817 = vmatpush.msra.mxu0 0.0
        %1818 = vmatpush.msra.mxu0 0.0
        %1819 = vmatpush.msra.mxu0 0.0
        %1820 = vmatpush.msra.mxu0 0.0
        %1821 = vmatpush.msra.mxu0 0.0
        %1822 = vmatpush.msra.mxu0 0.0
        %1823 = vmatpush.msra.mxu0 0.0
        %1824 = vmatpush.msra.mxu0 0.0
        %1825 = vmatpush.msra.mxu0 0.0
        %1826 = vmatpush.msra.mxu0 0.0
        %1827 = vmatpush.msra.mxu0 0.0
        %1828 = vmatpush.msra.mxu0 0.0
        %1829 = vmatpush.msra.mxu0 0.0
        %1830 = vmatpush.msra.mxu0 0.0
        %1831 = vmatpush.msra.mxu0 %v1805
        %1832 = vmatmul.f32.gmra.mxu0 %v1801
        %v1833 = vpop.f32.mrf.mxu0
        %v1834 = vadd.f32 %v1791, %v1833
        %1835 = vdwg.mxu0
        %1836 = vmatpush.msra.mxu0 0.0
        %1837 = vmatpush.msra.mxu0 0.0
        %1838 = vmatpush.msra.mxu0 0.0
        %1839 = vmatpush.msra.mxu0 0.0
        %1840 = vmatpush.msra.mxu0 0.0
        %1841 = vmatpush.msra.mxu0 0.0
        %1842 = vmatpush.msra.mxu0 0.0
        %1843 = vmatpush.msra.mxu0 0.0
        %1844 = vmatpush.msra.mxu0 0.0
        %1845 = vmatpush.msra.mxu0 0.0
        %1846 = vmatpush.msra.mxu0 0.0
        %1847 = vmatpush.msra.mxu0 0.0
        %1848 = vmatpush.msra.mxu0 0.0
        %1849 = vmatpush.msra.mxu0 0.0
        %1850 = vmatpush.msra.mxu0 0.0
        %1851 = vmatpush.msra.mxu0 %v1808
        %1852 = vmatmul.f32.gmra.mxu0 %v1801
        %v1853 = vpop.f32.mrf.mxu0
        %v1854 = vadd.f32 %v1792, %v1853
        %1855 = vdwg.mxu0
        %1856 = vmatpush.msra.mxu0 0.0
        %1857 = vmatpush.msra.mxu0 0.0
        %1858 = vmatpush.msra.mxu0 0.0
        %1859 = vmatpush.msra.mxu0 0.0
        %1860 = vmatpush.msra.mxu0 0.0
        %1861 = vmatpush.msra.mxu0 0.0
        %1862 = vmatpush.msra.mxu0 0.0
        %1863 = vmatpush.msra.mxu0 0.0
        %1864 = vmatpush.msra.mxu0 0.0
        %1865 = vmatpush.msra.mxu0 0.0
        %1866 = vmatpush.msra.mxu0 0.0
        %1867 = vmatpush.msra.mxu0 0.0
        %1868 = vmatpush.msra.mxu0 0.0
        %1869 = vmatpush.msra.mxu0 0.0
        %1870 = vmatpush.msra.mxu0 0.0
        %1871 = vmatpush.msra.mxu0 %v1811
        %1872 = vmatmul.f32.gmra.mxu0 %v1801
        %v1873 = vpop.f32.mrf.mxu0
        %v1874 = vadd.f32 %v1793, %v1873
        %1875 = vdwg.mxu0
        %1876 = vmatpush.msra.mxu0 0.0
        %1877 = vmatpush.msra.mxu0 0.0
        %1878 = vmatpush.msra.mxu0 0.0
        %1879 = vmatpush.msra.mxu0 0.0
        %1880 = vmatpush.msra.mxu0 0.0
        %1881 = vmatpush.msra.mxu0 0.0
        %1882 = vmatpush.msra.mxu0 0.0
        %1883 = vmatpush.msra.mxu0 0.0
        %1884 = vmatpush.msra.mxu0 0.0
        %1885 = vmatpush.msra.mxu0 0.0
        %1886 = vmatpush.msra.mxu0 0.0
        %1887 = vmatpush.msra.mxu0 0.0
        %1888 = vmatpush.msra.mxu0 0.0
        %1889 = vmatpush.msra.mxu0 0.0
        %1890 = vmatpush.msra.mxu0 0.0
        %1891 = vmatpush.msra.mxu0 %v1814
        %1892 = vmatmul.f32.gmra.mxu0 %v1801
        %v1893 = vpop.f32.mrf.mxu0
        %v1894 = vadd.f32 %v1794, %v1893
        %1895 = vdwg.mxu0
        %1896 = vst [vmem:[#allocation3] sm:$0xff] %v1834
        %1897 = vst [vmem:[#allocation3 + $0x8] sm:$0xff] %v1854
        %1898 = vst [vmem:[#allocation3 + $0x10] sm:$0xff] %v1874
        %1899 = vst [vmem:[#allocation3 + $0x18] sm:$0xff] %v1894
      $region52: #{chess_evaluator.1} parent=47 // pred_fallthru
        _
      %s1900 = smul.u32 %s18, 8
      %s1901 = sshra.s32 %s1900, 3
      %s1902 = sand.u32 %s1900, 7
      %s1903 = smul.u32 %s1901, 2
      %s1904 = smul.addr %s1903, 8
      %s1905 = scalar_lea.vmem [#allocation2], %s1904
      %v1906 = vld [vmem:[%s1905] sm:$0xff]
      %v1907 = vld [vmem:[%s1905 + $0x8] sm:$0xff]
      %v1908 = vpack.c.bf16 %v1906, %v1906
      %v1909 = vpack.c.bf16 %v1907, %v1907
      %v1910 = vld [vmem:[#allocation3] sm:$0xff]
      %v1911 = vld [vmem:[#allocation3 + $0x8] sm:$0xff]
      %v1912 = vld [vmem:[#allocation3 + $0x10] sm:$0xff]
      %v1913 = vld [vmem:[#allocation3 + $0x18] sm:$0xff]
      %v1914 = vld [vmem:[%s263] sm:$0xff]
      %v1915 = vld [vmem:[%s263 + $0x8] sm:$0xff]
      %v1916 = vld [vmem:[%s263 + $0x10] sm:$0xff]
      %v1917 = vld [vmem:[%s263 + $0x18] sm:$0xff]
      %v1918 = vld [vmem:[%s263 + $0x20] sm:$0xff]
      %v1919 = vld [vmem:[%s263 + $0x28] sm:$0xff]
      %v1920 = vld [vmem:[%s263 + $0x30] sm:$0xff]
      %v1921 = vld [vmem:[%s263 + $0x38] sm:$0xff]
      %v1922 = vld [vmem:[%s263 + $0x40] sm:$0xff]
      %v1923 = vld [vmem:[%s263 + $0x48] sm:$0xff]
      %v1924 = vld [vmem:[%s263 + $0x50] sm:$0xff]
      %v1925 = vld [vmem:[%s263 + $0x58] sm:$0xff]
      %v1926 = vld [vmem:[%s263 + $0x60] sm:$0xff]
      %v1927 = vld [vmem:[%s263 + $0x68] sm:$0xff]
      %v1928 = vld [vmem:[%s263 + $0x70] sm:$0xff]
      %v1929 = vld [vmem:[%s263 + $0x78] sm:$0xff]
      %v1930 = vld [vmem:[%s263 + $0x80] sm:$0xff]
      %v1931 = vld [vmem:[%s263 + $0x88] sm:$0xff]
      %v1932 = vld [vmem:[%s263 + $0x90] sm:$0xff]
      %v1933 = vld [vmem:[%s263 + $0x98] sm:$0xff]
      %v1934 = vld [vmem:[%s263 + $0xa0] sm:$0xff]
      %v1935 = vld [vmem:[%s263 + $0xa8] sm:$0xff]
      %v1936 = vld [vmem:[%s263 + $0xb0] sm:$0xff]
      %v1937 = vld [vmem:[%s263 + $0xb8] sm:$0xff]
      %v1938 = vld [vmem:[%s263 + $0xc0] sm:$0xff]
      %v1939 = vld [vmem:[%s263 + $0xc8] sm:$0xff]
      %v1940 = vld [vmem:[%s263 + $0xd0] sm:$0xff]
      %v1941 = vld [vmem:[%s263 + $0xd8] sm:$0xff]
      %v1942 = vld [vmem:[%s263 + $0xe0] sm:$0xff]
      %v1943 = vld [vmem:[%s263 + $0xe8] sm:$0xff]
      %v1944 = vld [vmem:[%s263 + $0xf0] sm:$0xff]
      %v1945 = vld [vmem:[%s263 + $0xf8] sm:$0xff]
      %v1946 = vld [vmem:[%s263 + $0x100] sm:$0xff]
      %v1947 = vld [vmem:[%s263 + $0x108] sm:$0xff]
      %v1948 = vld [vmem:[%s263 + $0x110] sm:$0xff]
      %v1949 = vld [vmem:[%s263 + $0x118] sm:$0xff]
      %v1950 = vld [vmem:[%s263 + $0x120] sm:$0xff]
      %v1951 = vld [vmem:[%s263 + $0x128] sm:$0xff]
      %v1952 = vld [vmem:[%s263 + $0x130] sm:$0xff]
      %v1953 = vld [vmem:[%s263 + $0x138] sm:$0xff]
      %v1954 = vld [vmem:[%s263 + $0x140] sm:$0xff]
      %v1955 = vld [vmem:[%s263 + $0x148] sm:$0xff]
      %v1956 = vld [vmem:[%s263 + $0x150] sm:$0xff]
      %v1957 = vld [vmem:[%s263 + $0x158] sm:$0xff]
      %v1958 = vld [vmem:[%s263 + $0x160] sm:$0xff]
      %v1959 = vld [vmem:[%s263 + $0x168] sm:$0xff]
      %v1960 = vld [vmem:[%s263 + $0x170] sm:$0xff]
      %v1961 = vld [vmem:[%s263 + $0x178] sm:$0xff]
      %v1962 = vld [vmem:[%s263 + $0x180] sm:$0xff]
      %v1963 = vld [vmem:[%s263 + $0x188] sm:$0xff]
      %v1964 = vld [vmem:[%s263 + $0x190] sm:$0xff]
      %v1965 = vld [vmem:[%s263 + $0x198] sm:$0xff]
      %v1966 = vld [vmem:[%s263 + $0x1a0] sm:$0xff]
      %v1967 = vld [vmem:[%s263 + $0x1a8] sm:$0xff]
      %v1968 = vld [vmem:[%s263 + $0x1b0] sm:$0xff]
      %v1969 = vld [vmem:[%s263 + $0x1b8] sm:$0xff]
      %v1970 = vld [vmem:[%s263 + $0x1c0] sm:$0xff]
      %v1971 = vld [vmem:[%s263 + $0x1c8] sm:$0xff]
      %v1972 = vld [vmem:[%s263 + $0x1d0] sm:$0xff]
      %v1973 = vld [vmem:[%s263 + $0x1d8] sm:$0xff]
      %v1974 = vld [vmem:[%s263 + $0x1e0] sm:$0xff]
      %v1975 = vld [vmem:[%s263 + $0x1e8] sm:$0xff]
      %v1976 = vld [vmem:[%s263 + $0x1f0] sm:$0xff]
      %v1977 = vld [vmem:[%s263 + $0x1f8] sm:$0xff]
      %v2042 = vunpack.c.l.b16 %v1914
      %v2043 = vunpack.c.h.b16 %v1914
      %v2044 = vunpack.c.l.b16 %v1915
      %v2045 = vunpack.c.h.b16 %v1915
      %v2046 = vunpack.c.l.b16 %v1916
      %v2047 = vunpack.c.h.b16 %v1916
      %v2048 = vunpack.c.l.b16 %v1917
      %v2049 = vunpack.c.h.b16 %v1917
      %v2050 = vunpack.c.l.b16 %v1918
      %v2051 = vunpack.c.h.b16 %v1918
      %v2052 = vunpack.c.l.b16 %v1919
      %v2053 = vunpack.c.h.b16 %v1919
      %v2054 = vunpack.c.l.b16 %v1920
      %v2055 = vunpack.c.h.b16 %v1920
      %v2056 = vunpack.c.l.b16 %v1921
      %v2057 = vunpack.c.h.b16 %v1921
      %v2058 = vunpack.c.l.b16 %v1922
      %v2059 = vunpack.c.h.b16 %v1922
      %v2060 = vunpack.c.l.b16 %v1923
      %v2061 = vunpack.c.h.b16 %v1923
      %v2062 = vunpack.c.l.b16 %v1924
      %v2063 = vunpack.c.h.b16 %v1924
      %v2064 = vunpack.c.l.b16 %v1925
      %v2065 = vunpack.c.h.b16 %v1925
      %v2066 = vunpack.c.l.b16 %v1926
      %v2067 = vunpack.c.h.b16 %v1926
      %v2068 = vunpack.c.l.b16 %v1927
      %v2069 = vunpack.c.h.b16 %v1927
      %v2070 = vunpack.c.l.b16 %v1928
      %v2071 = vunpack.c.h.b16 %v1928
      %v2072 = vunpack.c.l.b16 %v1929
      %v2073 = vunpack.c.h.b16 %v1929
      %v2074 = vunpack.c.l.b16 %v1930
      %v2075 = vunpack.c.h.b16 %v1930
      %v2076 = vunpack.c.l.b16 %v1931
      %v2077 = vunpack.c.h.b16 %v1931
      %v2078 = vunpack.c.l.b16 %v1932
      %v2079 = vunpack.c.h.b16 %v1932
      %v2080 = vunpack.c.l.b16 %v1933
      %v2081 = vunpack.c.h.b16 %v1933
      %v2082 = vunpack.c.l.b16 %v1934
      %v2083 = vunpack.c.h.b16 %v1934
      %v2084 = vunpack.c.l.b16 %v1935
      %v2085 = vunpack.c.h.b16 %v1935
      %v2086 = vunpack.c.l.b16 %v1936
      %v2087 = vunpack.c.h.b16 %v1936
      %v2088 = vunpack.c.l.b16 %v1937
      %v2089 = vunpack.c.h.b16 %v1937
      %v2090 = vunpack.c.l.b16 %v1938
      %v2091 = vunpack.c.h.b16 %v1938
      %v2092 = vunpack.c.l.b16 %v1939
      %v2093 = vunpack.c.h.b16 %v1939
      %v2094 = vunpack.c.l.b16 %v1940
      %v2095 = vunpack.c.h.b16 %v1940
      %v2096 = vunpack.c.l.b16 %v1941
      %v2097 = vunpack.c.h.b16 %v1941
      %v2098 = vunpack.c.l.b16 %v1942
      %v2099 = vunpack.c.h.b16 %v1942
      %v2100 = vunpack.c.l.b16 %v1943
      %v2101 = vunpack.c.h.b16 %v1943
      %v2102 = vunpack.c.l.b16 %v1944
      %v2103 = vunpack.c.h.b16 %v1944
      %v2104 = vunpack.c.l.b16 %v1945
      %v2105 = vunpack.c.h.b16 %v1945
      %v2106 = vunpack.c.l.b16 %v1946
      %v2107 = vunpack.c.h.b16 %v1946
      %v2108 = vunpack.c.l.b16 %v1947
      %v2109 = vunpack.c.h.b16 %v1947
      %v2110 = vunpack.c.l.b16 %v1948
      %v2111 = vunpack.c.h.b16 %v1948
      %v2112 = vunpack.c.l.b16 %v1949
      %v2113 = vunpack.c.h.b16 %v1949
      %v2114 = vunpack.c.l.b16 %v1950
      %v2115 = vunpack.c.h.b16 %v1950
      %v2116 = vunpack.c.l.b16 %v1951
      %v2117 = vunpack.c.h.b16 %v1951
      %v2118 = vunpack.c.l.b16 %v1952
      %v2119 = vunpack.c.h.b16 %v1952
      %v2120 = vunpack.c.l.b16 %v1953
      %v2121 = vunpack.c.h.b16 %v1953
      %v2122 = vunpack.c.l.b16 %v1954
      %v2123 = vunpack.c.h.b16 %v1954
      %v2124 = vunpack.c.l.b16 %v1955
      %v2125 = vunpack.c.h.b16 %v1955
      %v2126 = vunpack.c.l.b16 %v1956
      %v2127 = vunpack.c.h.b16 %v1956
      %v2128 = vunpack.c.l.b16 %v1957
      %v2129 = vunpack.c.h.b16 %v1957
      %v2130 = vunpack.c.l.b16 %v1958
      %v2131 = vunpack.c.h.b16 %v1958
      %v2132 = vunpack.c.l.b16 %v1959
      %v2133 = vunpack.c.h.b16 %v1959
      %v2134 = vunpack.c.l.b16 %v1960
      %v2135 = vunpack.c.h.b16 %v1960
      %v2136 = vunpack.c.l.b16 %v1961
      %v2137 = vunpack.c.h.b16 %v1961
      %v2138 = vunpack.c.l.b16 %v1962
      %v2139 = vunpack.c.h.b16 %v1962
      %v2140 = vunpack.c.l.b16 %v1963
      %v2141 = vunpack.c.h.b16 %v1963
      %v2142 = vunpack.c.l.b16 %v1964
      %v2143 = vunpack.c.h.b16 %v1964
      %v2144 = vunpack.c.l.b16 %v1965
      %v2145 = vunpack.c.h.b16 %v1965
      %v2146 = vunpack.c.l.b16 %v1966
      %v2147 = vunpack.c.h.b16 %v1966
      %v2148 = vunpack.c.l.b16 %v1967
      %v2149 = vunpack.c.h.b16 %v1967
      %v2150 = vunpack.c.l.b16 %v1968
      %v2151 = vunpack.c.h.b16 %v1968
      %v2152 = vunpack.c.l.b16 %v1969
      %v2153 = vunpack.c.h.b16 %v1969
      %v2154 = vunpack.c.l.b16 %v1970
      %v2155 = vunpack.c.h.b16 %v1970
      %v2156 = vunpack.c.l.b16 %v1971
      %v2157 = vunpack.c.h.b16 %v1971
      %v2158 = vunpack.c.l.b16 %v1972
      %v2159 = vunpack.c.h.b16 %v1972
      %v2160 = vunpack.c.l.b16 %v1973
      %v2161 = vunpack.c.h.b16 %v1973
      %v2162 = vunpack.c.l.b16 %v1974
      %v2163 = vunpack.c.h.b16 %v1974
      %v2164 = vunpack.c.l.b16 %v1975
      %v2165 = vunpack.c.h.b16 %v1975
      %v2166 = vunpack.c.l.b16 %v1976
      %v2167 = vunpack.c.h.b16 %v1976
      %v2168 = vunpack.c.l.b16 %v1977
      %v2169 = vunpack.c.h.b16 %v1977
      %v2170 = vpack.c.b16 %v2046, %v2042
      %v2171 = vpack.c.b16 %v2047, %v2043
      %v2172 = vpack.c.b16 %v2048, %v2044
      %v2173 = vpack.c.b16 %v2049, %v2045
      %v2174 = vpack.c.b16 %v2054, %v2050
      %v2175 = vpack.c.b16 %v2055, %v2051
      %v2176 = vpack.c.b16 %v2056, %v2052
      %v2177 = vpack.c.b16 %v2057, %v2053
      %v2178 = vpack.c.b16 %v2062, %v2058
      %v2179 = vpack.c.b16 %v2063, %v2059
      %v2180 = vpack.c.b16 %v2064, %v2060
      %v2181 = vpack.c.b16 %v2065, %v2061
      %v2182 = vpack.c.b16 %v2070, %v2066
      %v2183 = vpack.c.b16 %v2071, %v2067
      %v2184 = vpack.c.b16 %v2072, %v2068
      %v2185 = vpack.c.b16 %v2073, %v2069
      %v2186 = vpack.c.b16 %v2078, %v2074
      %v2187 = vpack.c.b16 %v2079, %v2075
      %v2188 = vpack.c.b16 %v2080, %v2076
      %v2189 = vpack.c.b16 %v2081, %v2077
      %v2190 = vpack.c.b16 %v2086, %v2082
      %v2191 = vpack.c.b16 %v2087, %v2083
      %v2192 = vpack.c.b16 %v2088, %v2084
      %v2193 = vpack.c.b16 %v2089, %v2085
      %v2194 = vpack.c.b16 %v2094, %v2090
      %v2195 = vpack.c.b16 %v2095, %v2091
      %v2196 = vpack.c.b16 %v2096, %v2092
      %v2197 = vpack.c.b16 %v2097, %v2093
      %v2198 = vpack.c.b16 %v2102, %v2098
      %v2199 = vpack.c.b16 %v2103, %v2099
      %v2200 = vpack.c.b16 %v2104, %v2100
      %v2201 = vpack.c.b16 %v2105, %v2101
      %v2202 = vpack.c.b16 %v2110, %v2106
      %v2203 = vpack.c.b16 %v2111, %v2107
      %v2204 = vpack.c.b16 %v2112, %v2108
      %v2205 = vpack.c.b16 %v2113, %v2109
      %v2206 = vpack.c.b16 %v2118, %v2114
      %v2207 = vpack.c.b16 %v2119, %v2115
      %v2208 = vpack.c.b16 %v2120, %v2116
      %v2209 = vpack.c.b16 %v2121, %v2117
      %v2210 = vpack.c.b16 %v2126, %v2122
      %v2211 = vpack.c.b16 %v2127, %v2123
      %v2212 = vpack.c.b16 %v2128, %v2124
      %v2213 = vpack.c.b16 %v2129, %v2125
      %v2214 = vpack.c.b16 %v2134, %v2130
      %v2215 = vpack.c.b16 %v2135, %v2131
      %v2216 = vpack.c.b16 %v2136, %v2132
      %v2217 = vpack.c.b16 %v2137, %v2133
      %v2218 = vpack.c.b16 %v2142, %v2138
      %v2219 = vpack.c.b16 %v2143, %v2139
      %v2220 = vpack.c.b16 %v2144, %v2140
      %v2221 = vpack.c.b16 %v2145, %v2141
      %v2222 = vpack.c.b16 %v2150, %v2146
      %v2223 = vpack.c.b16 %v2151, %v2147
      %v2224 = vpack.c.b16 %v2152, %v2148
      %v2225 = vpack.c.b16 %v2153, %v2149
      %v2226 = vpack.c.b16 %v2158, %v2154
      %v2227 = vpack.c.b16 %v2159, %v2155
      %v2228 = vpack.c.b16 %v2160, %v2156
      %v2229 = vpack.c.b16 %v2161, %v2157
      %v2230 = vpack.c.b16 %v2166, %v2162
      %v2231 = vpack.c.b16 %v2167, %v2163
      %v2232 = vpack.c.b16 %v2168, %v2164
      %v2233 = vpack.c.b16 %v2169, %v2165
      %2298 = vmatpush.bf16.msra.mxu0 %v2198
      %2299 = vmatpush.bf16.msra.mxu0 %v2194
      %2300 = vmatpush.bf16.msra.mxu0 %v2190
      %2301 = vmatpush.bf16.msra.mxu0 %v2186
      %2302 = vmatpush.bf16.msra.mxu0 %v2182
      %2303 = vmatpush.bf16.msra.mxu0 %v2178
      %2304 = vmatpush.bf16.msra.mxu0 %v2174
      %2305 = vmatpush.bf16.msra.mxu0 %v2170
      %2306 = vmatmul.bf16.gmra.mxu0 %v1908
      %v2307 = vpop.f32.mrf.mxu0
      %v2308 = vadd.f32 0.0, %v2307
      %v2309 = vpop.f32.mrf.mxu0
      %2310 = vdwg.mxu0
      %2311 = vmatpush.bf16.msra.mxu0 %v2230
      %2312 = vmatpush.bf16.msra.mxu0 %v2226
      %2313 = vmatpush.bf16.msra.mxu0 %v2222
      %2314 = vmatpush.bf16.msra.mxu0 %v2218
      %2315 = vmatpush.bf16.msra.mxu0 %v2214
      %2316 = vmatpush.bf16.msra.mxu0 %v2210
      %2317 = vmatpush.bf16.msra.mxu0 %v2206
      %2318 = vmatpush.bf16.msra.mxu0 %v2202
      %2319 = vmatmul.bf16.gmra.mxu0 %v1909
      %v2320 = vpop.f32.mrf.mxu0
      %v2321 = vadd.f32 %v2308, %v2320
      %v2322 = vpop.f32.mrf.mxu0
      %2323 = vdwg.mxu0
      %2324 = vmatpush.bf16.msra.mxu0 %v2199
      %2325 = vmatpush.bf16.msra.mxu0 %v2195
      %2326 = vmatpush.bf16.msra.mxu0 %v2191
      %2327 = vmatpush.bf16.msra.mxu0 %v2187
      %2328 = vmatpush.bf16.msra.mxu0 %v2183
      %2329 = vmatpush.bf16.msra.mxu0 %v2179
      %2330 = vmatpush.bf16.msra.mxu0 %v2175
      %2331 = vmatpush.bf16.msra.mxu0 %v2171
      %2332 = vmatmul.bf16.gmra.mxu0 %v1908
      %v2333 = vpop.f32.mrf.mxu0
      %v2334 = vadd.f32 0.0, %v2333
      %v2335 = vpop.f32.mrf.mxu0
      %2336 = vdwg.mxu0
      %2337 = vmatpush.bf16.msra.mxu0 %v2231
      %2338 = vmatpush.bf16.msra.mxu0 %v2227
      %2339 = vmatpush.bf16.msra.mxu0 %v2223
      %2340 = vmatpush.bf16.msra.mxu0 %v2219
      %2341 = vmatpush.bf16.msra.mxu0 %v2215
      %2342 = vmatpush.bf16.msra.mxu0 %v2211
      %2343 = vmatpush.bf16.msra.mxu0 %v2207
      %2344 = vmatpush.bf16.msra.mxu0 %v2203
      %2345 = vmatmul.bf16.gmra.mxu0 %v1909
      %v2346 = vpop.f32.mrf.mxu0
      %v2347 = vadd.f32 %v2334, %v2346
      %v2348 = vpop.f32.mrf.mxu0
      %2349 = vdwg.mxu0
      %2350 = vmatpush.bf16.msra.mxu0 %v2200
      %2351 = vmatpush.bf16.msra.mxu0 %v2196
      %2352 = vmatpush.bf16.msra.mxu0 %v2192
      %2353 = vmatpush.bf16.msra.mxu0 %v2188
      %2354 = vmatpush.bf16.msra.mxu0 %v2184
      %2355 = vmatpush.bf16.msra.mxu0 %v2180
      %2356 = vmatpush.bf16.msra.mxu0 %v2176
      %2357 = vmatpush.bf16.msra.mxu0 %v2172
      %2358 = vmatmul.bf16.gmra.mxu0 %v1908
      %v2359 = vpop.f32.mrf.mxu0
      %v2360 = vadd.f32 0.0, %v2359
      %v2361 = vpop.f32.mrf.mxu0
      %2362 = vdwg.mxu0
      %2363 = vmatpush.bf16.msra.mxu0 %v2232
      %2364 = vmatpush.bf16.msra.mxu0 %v2228
      %2365 = vmatpush.bf16.msra.mxu0 %v2224
      %2366 = vmatpush.bf16.msra.mxu0 %v2220
      %2367 = vmatpush.bf16.msra.mxu0 %v2216
      %2368 = vmatpush.bf16.msra.mxu0 %v2212
      %2369 = vmatpush.bf16.msra.mxu0 %v2208
      %2370 = vmatpush.bf16.msra.mxu0 %v2204
      %2371 = vmatmul.bf16.gmra.mxu0 %v1909
      %v2372 = vpop.f32.mrf.mxu0
      %v2373 = vadd.f32 %v2360, %v2372
      %v2374 = vpop.f32.mrf.mxu0
      %2375 = vdwg.mxu0
      %2376 = vmatpush.bf16.msra.mxu0 %v2201
      %2377 = vmatpush.bf16.msra.mxu0 %v2197
      %2378 = vmatpush.bf16.msra.mxu0 %v2193
      %2379 = vmatpush.bf16.msra.mxu0 %v2189
      %2380 = vmatpush.bf16.msra.mxu0 %v2185
      %2381 = vmatpush.bf16.msra.mxu0 %v2181
      %2382 = vmatpush.bf16.msra.mxu0 %v2177
      %2383 = vmatpush.bf16.msra.mxu0 %v2173
      %2384 = vmatmul.bf16.gmra.mxu0 %v1908
      %v2385 = vpop.f32.mrf.mxu0
      %v2386 = vadd.f32 0.0, %v2385
      %v2387 = vpop.f32.mrf.mxu0
      %2388 = vdwg.mxu0
      %2389 = vmatpush.bf16.msra.mxu0 %v2233
      %2390 = vmatpush.bf16.msra.mxu0 %v2229
      %2391 = vmatpush.bf16.msra.mxu0 %v2225
      %2392 = vmatpush.bf16.msra.mxu0 %v2221
      %2393 = vmatpush.bf16.msra.mxu0 %v2217
      %2394 = vmatpush.bf16.msra.mxu0 %v2213
      %2395 = vmatpush.bf16.msra.mxu0 %v2209
      %2396 = vmatpush.bf16.msra.mxu0 %v2205
      %2397 = vmatmul.bf16.gmra.mxu0 %v1909
      %v2398 = vpop.f32.mrf.mxu0
      %v2399 = vadd.f32 %v2386, %v2398
      %v2400 = vpop.f32.mrf.mxu0
      %2401 = vdwg.mxu0
      %v2402 = vadd.f32 %v1910, %v2321
      %v2403 = vadd.f32 %v1911, %v2347
      %v2404 = vadd.f32 %v1912, %v2373
      %v2405 = vadd.f32 %v1913, %v2399
      %2406 = vst [vmem:[#allocation3] sm:$0xff] %v2402
      %2407 = vst [vmem:[#allocation3 + $0x8] sm:$0xff] %v2403
      %2408 = vst [vmem:[#allocation3 + $0x10] sm:$0xff] %v2404
      %2409 = vst [vmem:[#allocation3 + $0x18] sm:$0xff] %v2405
      %p2410 = scmp.eq.s32.totalorder %s18, 15
      // Predicated region
      $region53: #{chess_evaluator.1} parent=47 // pred_check
        %p2411 = pneg %p2410
      $region54: #{chess_evaluator.1} parent=47 // pred_check_branch
        %2413 = sbr.rel (%p2411) target = $region56
      $region55: #{chess_evaluator.1} parent=47 // pred_region
        %s2414 = scalar_lea.vmem %s6, 6
        %v2415 = vld [vmem:[%s2414] ss:$8 sm:$0x3]
        %v2416 = vld [vmem:[%s6 + $0x16] ss:$0 sm:$0xff]
        %v2417 = vld [vmem:[%s6 + $0x1e] ss:$0 sm:$0xff]
        %v2418 = vld [vmem:[%s6 + $0x17] ss:$0 sm:$0xff]
        %v2419 = vld [vmem:[%s6 + $0x1f] ss:$0 sm:$0xff]
        %v2420 = vld [vmem:[#allocation3] sm:$0xff]
        %v2421 = vld [vmem:[#allocation3 + $0x8] sm:$0xff]
        %v2422 = vld [vmem:[#allocation3 + $0x10] sm:$0xff]
        %v2423 = vld [vmem:[#allocation3 + $0x18] sm:$0xff]
        %v2424 = vmax.f32 %v2420, 0.0
        %v2425 = vmax.f32 %v2421, 0.0
        %v2426 = vmax.f32 %v2422, 0.0
        %v2427 = vmax.f32 %v2423, 0.0
        %v2428 = vpack.c.bf16 %v2424, %v2424
        %v2429 = vpack.c.bf16 %v2425, %v2425
        %v2430 = vpack.c.bf16 %v2426, %v2426
        %v2431 = vpack.c.bf16 %v2427, %v2427
        %v2432 = vld [vmem:[%s3] sm:$0xff]
        %v2433 = vld [vmem:[%s3 + $0x8] sm:$0xff]
        %v2434 = vld [vmem:[%s3 + $0x10] sm:$0xff]
        %v2435 = vld [vmem:[%s3 + $0x18] sm:$0xff]
        %v2436 = vld [vmem:[%s3 + $0x20] sm:$0xff]
        %v2437 = vld [vmem:[%s3 + $0x28] sm:$0xff]
        %v2438 = vld [vmem:[%s3 + $0x30] sm:$0xff]
        %v2439 = vld [vmem:[%s3 + $0x38] sm:$0xff]
        %v2440 = vld [vmem:[%s3 + $0x40] sm:$0xff]
        %v2441 = vld [vmem:[%s3 + $0x48] sm:$0xff]
        %v2442 = vld [vmem:[%s3 + $0x50] sm:$0xff]
        %v2443 = vld [vmem:[%s3 + $0x58] sm:$0xff]
        %v2444 = vld [vmem:[%s3 + $0x60] sm:$0xff]
        %v2445 = vld [vmem:[%s3 + $0x68] sm:$0xff]
        %v2446 = vld [vmem:[%s3 + $0x70] sm:$0xff]
        %v2447 = vld [vmem:[%s3 + $0x78] sm:$0xff]
        %v2448 = vld [vmem:[%s3 + $0x80] sm:$0xff]
        %v2449 = vld [vmem:[%s3 + $0x88] sm:$0xff]
        %v2450 = vld [vmem:[%s3 + $0x90] sm:$0xff]
        %v2451 = vld [vmem:[%s3 + $0x98] sm:$0xff]
        %v2452 = vld [vmem:[%s3 + $0xa0] sm:$0xff]
        %v2453 = vld [vmem:[%s3 + $0xa8] sm:$0xff]
        %v2454 = vld [vmem:[%s3 + $0xb0] sm:$0xff]
        %v2455 = vld [vmem:[%s3 + $0xb8] sm:$0xff]
        %v2456 = vld [vmem:[%s3 + $0xc0] sm:$0xff]
        %v2457 = vld [vmem:[%s3 + $0xc8] sm:$0xff]
        %v2458 = vld [vmem:[%s3 + $0xd0] sm:$0xff]
        %v2459 = vld [vmem:[%s3 + $0xd8] sm:$0xff]
        %v2460 = vld [vmem:[%s3 + $0xe0] sm:$0xff]
        %v2461 = vld [vmem:[%s3 + $0xe8] sm:$0xff]
        %v2462 = vld [vmem:[%s3 + $0xf0] sm:$0xff]
        %v2463 = vld [vmem:[%s3 + $0xf8] sm:$0xff]
        %v2464 = vld [vmem:[%s3 + $0x100] sm:$0xff]
        %v2465 = vld [vmem:[%s3 + $0x108] sm:$0xff]
        %v2466 = vld [vmem:[%s3 + $0x110] sm:$0xff]
        %v2467 = vld [vmem:[%s3 + $0x118] sm:$0xff]
        %v2468 = vld [vmem:[%s3 + $0x120] sm:$0xff]
        %v2469 = vld [vmem:[%s3 + $0x128] sm:$0xff]
        %v2470 = vld [vmem:[%s3 + $0x130] sm:$0xff]
        %v2471 = vld [vmem:[%s3 + $0x138] sm:$0xff]
        %v2472 = vld [vmem:[%s3 + $0x140] sm:$0xff]
        %v2473 = vld [vmem:[%s3 + $0x148] sm:$0xff]
        %v2474 = vld [vmem:[%s3 + $0x150] sm:$0xff]
        %v2475 = vld [vmem:[%s3 + $0x158] sm:$0xff]
        %v2476 = vld [vmem:[%s3 + $0x160] sm:$0xff]
        %v2477 = vld [vmem:[%s3 + $0x168] sm:$0xff]
        %v2478 = vld [vmem:[%s3 + $0x170] sm:$0xff]
        %v2479 = vld [vmem:[%s3 + $0x178] sm:$0xff]
        %v2480 = vld [vmem:[%s3 + $0x180] sm:$0xff]
        %v2481 = vld [vmem:[%s3 + $0x188] sm:$0xff]
        %v2482 = vld [vmem:[%s3 + $0x190] sm:$0xff]
        %v2483 = vld [vmem:[%s3 + $0x198] sm:$0xff]
        %v2484 = vld [vmem:[%s3 + $0x1a0] sm:$0xff]
        %v2485 = vld [vmem:[%s3 + $0x1a8] sm:$0xff]
        %v2486 = vld [vmem:[%s3 + $0x1b0] sm:$0xff]
        %v2487 = vld [vmem:[%s3 + $0x1b8] sm:$0xff]
        %v2488 = vld [vmem:[%s3 + $0x1c0] sm:$0xff]
        %v2489 = vld [vmem:[%s3 + $0x1c8] sm:$0xff]
        %v2490 = vld [vmem:[%s3 + $0x1d0] sm:$0xff]
        %v2491 = vld [vmem:[%s3 + $0x1d8] sm:$0xff]
        %v2492 = vld [vmem:[%s3 + $0x1e0] sm:$0xff]
        %v2493 = vld [vmem:[%s3 + $0x1e8] sm:$0xff]
        %v2494 = vld [vmem:[%s3 + $0x1f0] sm:$0xff]
        %v2495 = vld [vmem:[%s3 + $0x1f8] sm:$0xff]
        %v2497 = vperm.slane %v2415, 0
        %v2498 = vperm.slane %v2415, 1
        %v2565 = vunpack.c.l.b16 %v2432
        %v2566 = vunpack.c.h.b16 %v2432
        %v2567 = vunpack.c.l.b16 %v2433
        %v2568 = vunpack.c.h.b16 %v2433
        %v2569 = vunpack.c.l.b16 %v2434
        %v2570 = vunpack.c.h.b16 %v2434
        %v2571 = vunpack.c.l.b16 %v2435
        %v2572 = vunpack.c.h.b16 %v2435
        %v2573 = vunpack.c.l.b16 %v2436
        %v2574 = vunpack.c.h.b16 %v2436
        %v2575 = vunpack.c.l.b16 %v2437
        %v2576 = vunpack.c.h.b16 %v2437
        %v2577 = vunpack.c.l.b16 %v2438
        %v2578 = vunpack.c.h.b16 %v2438
        %v2579 = vunpack.c.l.b16 %v2439
        %v2580 = vunpack.c.h.b16 %v2439
        %v2581 = vunpack.c.l.b16 %v2440
        %v2582 = vunpack.c.h.b16 %v2440
        %v2583 = vunpack.c.l.b16 %v2441
        %v2584 = vunpack.c.h.b16 %v2441
        %v2585 = vunpack.c.l.b16 %v2442
        %v2586 = vunpack.c.h.b16 %v2442
        %v2587 = vunpack.c.l.b16 %v2443
        %v2588 = vunpack.c.h.b16 %v2443
        %v2589 = vunpack.c.l.b16 %v2444
        %v2590 = vunpack.c.h.b16 %v2444
        %v2591 = vunpack.c.l.b16 %v2445
        %v2592 = vunpack.c.h.b16 %v2445
        %v2593 = vunpack.c.l.b16 %v2446
        %v2594 = vunpack.c.h.b16 %v2446
        %v2595 = vunpack.c.l.b16 %v2447
        %v2596 = vunpack.c.h.b16 %v2447
        %v2597 = vunpack.c.l.b16 %v2448
        %v2598 = vunpack.c.h.b16 %v2448
        %v2599 = vunpack.c.l.b16 %v2449
        %v2600 = vunpack.c.h.b16 %v2449
        %v2601 = vunpack.c.l.b16 %v2450
        %v2602 = vunpack.c.h.b16 %v2450
        %v2603 = vunpack.c.l.b16 %v2451
        %v2604 = vunpack.c.h.b16 %v2451
        %v2605 = vunpack.c.l.b16 %v2452
        %v2606 = vunpack.c.h.b16 %v2452
        %v2607 = vunpack.c.l.b16 %v2453
        %v2608 = vunpack.c.h.b16 %v2453
        %v2609 = vunpack.c.l.b16 %v2454
        %v2610 = vunpack.c.h.b16 %v2454
        %v2611 = vunpack.c.l.b16 %v2455
        %v2612 = vunpack.c.h.b16 %v2455
        %v2613 = vunpack.c.l.b16 %v2456
        %v2614 = vunpack.c.h.b16 %v2456
        %v2615 = vunpack.c.l.b16 %v2457
        %v2616 = vunpack.c.h.b16 %v2457
        %v2617 = vunpack.c.l.b16 %v2458
        %v2618 = vunpack.c.h.b16 %v2458
        %v2619 = vunpack.c.l.b16 %v2459
        %v2620 = vunpack.c.h.b16 %v2459
        %v2621 = vunpack.c.l.b16 %v2460
        %v2622 = vunpack.c.h.b16 %v2460
        %v2623 = vunpack.c.l.b16 %v2461
        %v2624 = vunpack.c.h.b16 %v2461
        %v2625 = vunpack.c.l.b16 %v2462
        %v2626 = vunpack.c.h.b16 %v2462
        %v2627 = vunpack.c.l.b16 %v2463
        %v2628 = vunpack.c.h.b16 %v2463
        %v2629 = vunpack.c.l.b16 %v2464
        %v2630 = vunpack.c.h.b16 %v2464
        %v2631 = vunpack.c.l.b16 %v2465
        %v2632 = vunpack.c.h.b16 %v2465
        %v2633 = vunpack.c.l.b16 %v2466
        %v2634 = vunpack.c.h.b16 %v2466
        %v2635 = vunpack.c.l.b16 %v2467
        %v2636 = vunpack.c.h.b16 %v2467
        %v2637 = vunpack.c.l.b16 %v2468
        %v2638 = vunpack.c.h.b16 %v2468
        %v2639 = vunpack.c.l.b16 %v2469
        %v2640 = vunpack.c.h.b16 %v2469
        %v2641 = vunpack.c.l.b16 %v2470
        %v2642 = vunpack.c.h.b16 %v2470
        %v2643 = vunpack.c.l.b16 %v2471
        %v2644 = vunpack.c.h.b16 %v2471
        %v2645 = vunpack.c.l.b16 %v2472
        %v2646 = vunpack.c.h.b16 %v2472
        %v2647 = vunpack.c.l.b16 %v2473
        %v2648 = vunpack.c.h.b16 %v2473
        %v2649 = vunpack.c.l.b16 %v2474
        %v2650 = vunpack.c.h.b16 %v2474
        %v2651 = vunpack.c.l.b16 %v2475
        %v2652 = vunpack.c.h.b16 %v2475
        %v2653 = vunpack.c.l.b16 %v2476
        %v2654 = vunpack.c.h.b16 %v2476
        %v2655 = vunpack.c.l.b16 %v2477
        %v2656 = vunpack.c.h.b16 %v2477
        %v2657 = vunpack.c.l.b16 %v2478
        %v2658 = vunpack.c.h.b16 %v2478
        %v2659 = vunpack.c.l.b16 %v2479
        %v2660 = vunpack.c.h.b16 %v2479
        %v2661 = vunpack.c.l.b16 %v2480
        %v2662 = vunpack.c.h.b16 %v2480
        %v2663 = vunpack.c.l.b16 %v2481
        %v2664 = vunpack.c.h.b16 %v2481
        %v2665 = vunpack.c.l.b16 %v2482
        %v2666 = vunpack.c.h.b16 %v2482
        %v2667 = vunpack.c.l.b16 %v2483
        %v2668 = vunpack.c.h.b16 %v2483
        %v2669 = vunpack.c.l.b16 %v2484
        %v2670 = vunpack.c.h.b16 %v2484
        %v2671 = vunpack.c.l.b16 %v2485
        %v2672 = vunpack.c.h.b16 %v2485
        %v2673 = vunpack.c.l.b16 %v2486
        %v2674 = vunpack.c.h.b16 %v2486
        %v2675 = vunpack.c.l.b16 %v2487
        %v2676 = vunpack.c.h.b16 %v2487
        %v2677 = vunpack.c.l.b16 %v2488
        %v2678 = vunpack.c.h.b16 %v2488
        %v2679 = vunpack.c.l.b16 %v2489
        %v2680 = vunpack.c.h.b16 %v2489
        %v2681 = vunpack.c.l.b16 %v2490
        %v2682 = vunpack.c.h.b16 %v2490
        %v2683 = vunpack.c.l.b16 %v2491
        %v2684 = vunpack.c.h.b16 %v2491
        %v2685 = vunpack.c.l.b16 %v2492
        %v2686 = vunpack.c.h.b16 %v2492
        %v2687 = vunpack.c.l.b16 %v2493
        %v2688 = vunpack.c.h.b16 %v2493
        %v2689 = vunpack.c.l.b16 %v2494
        %v2690 = vunpack.c.h.b16 %v2494
        %v2691 = vunpack.c.l.b16 %v2495
        %v2692 = vunpack.c.h.b16 %v2495
        %v2693 = vpack.c.b16 %v2567, %v2565
        %v2694 = vpack.c.b16 %v2568, %v2566
        %v2695 = vpack.c.b16 %v2571, %v2569
        %v2696 = vpack.c.b16 %v2572, %v2570
        %v2697 = vpack.c.b16 %v2575, %v2573
        %v2698 = vpack.c.b16 %v2576, %v2574
        %v2699 = vpack.c.b16 %v2579, %v2577
        %v2700 = vpack.c.b16 %v2580, %v2578
        %v2701 = vpack.c.b16 %v2583, %v2581
        %v2702 = vpack.c.b16 %v2584, %v2582
        %v2703 = vpack.c.b16 %v2587, %v2585
        %v2704 = vpack.c.b16 %v2588, %v2586
        %v2705 = vpack.c.b16 %v2591, %v2589
        %v2706 = vpack.c.b16 %v2592, %v2590
        %v2707 = vpack.c.b16 %v2595, %v2593
        %v2708 = vpack.c.b16 %v2596, %v2594
        %v2709 = vpack.c.b16 %v2599, %v2597
        %v2710 = vpack.c.b16 %v2600, %v2598
        %v2711 = vpack.c.b16 %v2603, %v2601
        %v2712 = vpack.c.b16 %v2604, %v2602
        %v2713 = vpack.c.b16 %v2607, %v2605
        %v2714 = vpack.c.b16 %v2608, %v2606
        %v2715 = vpack.c.b16 %v2611, %v2609
        %v2716 = vpack.c.b16 %v2612, %v2610
        %v2717 = vpack.c.b16 %v2615, %v2613
        %v2718 = vpack.c.b16 %v2616, %v2614
        %v2719 = vpack.c.b16 %v2619, %v2617
        %v2720 = vpack.c.b16 %v2620, %v2618
        %v2721 = vpack.c.b16 %v2623, %v2621
        %v2722 = vpack.c.b16 %v2624, %v2622
        %v2723 = vpack.c.b16 %v2627, %v2625
        %v2724 = vpack.c.b16 %v2628, %v2626
        %v2725 = vpack.c.b16 %v2631, %v2629
        %v2726 = vpack.c.b16 %v2632, %v2630
        %v2727 = vpack.c.b16 %v2635, %v2633
        %v2728 = vpack.c.b16 %v2636, %v2634
        %v2729 = vpack.c.b16 %v2639, %v2637
        %v2730 = vpack.c.b16 %v2640, %v2638
        %v2731 = vpack.c.b16 %v2643, %v2641
        %v2732 = vpack.c.b16 %v2644, %v2642
        %v2733 = vpack.c.b16 %v2647, %v2645
        %v2734 = vpack.c.b16 %v2648, %v2646
        %v2735 = vpack.c.b16 %v2651, %v2649
        %v2736 = vpack.c.b16 %v2652, %v2650
        %v2737 = vpack.c.b16 %v2655, %v2653
        %v2738 = vpack.c.b16 %v2656, %v2654
        %v2739 = vpack.c.b16 %v2659, %v2657
        %v2740 = vpack.c.b16 %v2660, %v2658
        %v2741 = vpack.c.b16 %v2663, %v2661
        %v2742 = vpack.c.b16 %v2664, %v2662
        %v2743 = vpack.c.b16 %v2667, %v2665
        %v2744 = vpack.c.b16 %v2668, %v2666
        %v2745 = vpack.c.b16 %v2671, %v2669
        %v2746 = vpack.c.b16 %v2672, %v2670
        %v2747 = vpack.c.b16 %v2675, %v2673
        %v2748 = vpack.c.b16 %v2676, %v2674
        %v2749 = vpack.c.b16 %v2679, %v2677
        %v2750 = vpack.c.b16 %v2680, %v2678
        %v2751 = vpack.c.b16 %v2683, %v2681
        %v2752 = vpack.c.b16 %v2684, %v2682
        %v2753 = vpack.c.b16 %v2687, %v2685
        %v2754 = vpack.c.b16 %v2688, %v2686
        %v2755 = vpack.c.b16 %v2691, %v2689
        %v2756 = vpack.c.b16 %v2692, %v2690
        %2821 = vmatpush.bf16.msra.mxu0 %v2707
        %2822 = vmatpush.bf16.msra.mxu0 %v2705
        %2823 = vmatpush.bf16.msra.mxu0 %v2703
        %2824 = vmatpush.bf16.msra.mxu0 %v2701
        %2825 = vmatpush.bf16.msra.mxu0 %v2699
        %2826 = vmatpush.bf16.msra.mxu0 %v2697
        %2827 = vmatpush.bf16.msra.mxu0 %v2695
        %2828 = vmatpush.bf16.msra.mxu0 %v2693
        %2829 = vmatmul.bf16.gmra.mxu0 %v2428
        %v2830 = vpop.f32.mrf.mxu0
        %v2831 = vadd.f32 %v2497, %v2830
        %v2832 = vpop.f32.mrf.mxu0
        %2833 = vdwg.mxu0
        %2834 = vmatpush.bf16.msra.mxu0 %v2723
        %2835 = vmatpush.bf16.msra.mxu0 %v2721
        %2836 = vmatpush.bf16.msra.mxu0 %v2719
        %2837 = vmatpush.bf16.msra.mxu0 %v2717
        %2838 = vmatpush.bf16.msra.mxu0 %v2715
        %2839 = vmatpush.bf16.msra.mxu0 %v2713
        %2840 = vmatpush.bf16.msra.mxu0 %v2711
        %2841 = vmatpush.bf16.msra.mxu0 %v2709
        %2842 = vmatmul.bf16.gmra.mxu0 %v2429
        %v2843 = vpop.f32.mrf.mxu0
        %v2844 = vadd.f32 %v2831, %v2843
        %v2845 = vpop.f32.mrf.mxu0
        %2846 = vdwg.mxu0
        %2847 = vmatpush.bf16.msra.mxu0 %v2739
        %2848 = vmatpush.bf16.msra.mxu0 %v2737
        %2849 = vmatpush.bf16.msra.mxu0 %v2735
        %2850 = vmatpush.bf16.msra.mxu0 %v2733
        %2851 = vmatpush.bf16.msra.mxu0 %v2731
        %2852 = vmatpush.bf16.msra.mxu0 %v2729
        %2853 = vmatpush.bf16.msra.mxu0 %v2727
        %2854 = vmatpush.bf16.msra.mxu0 %v2725
        %2855 = vmatmul.bf16.gmra.mxu0 %v2430
        %v2856 = vpop.f32.mrf.mxu0
        %v2857 = vadd.f32 %v2844, %v2856
        %v2858 = vpop.f32.mrf.mxu0
        %2859 = vdwg.mxu0
        %2860 = vmatpush.bf16.msra.mxu0 %v2755
        %2861 = vmatpush.bf16.msra.mxu0 %v2753
        %2862 = vmatpush.bf16.msra.mxu0 %v2751
        %2863 = vmatpush.bf16.msra.mxu0 %v2749
        %2864 = vmatpush.bf16.msra.mxu0 %v2747
        %2865 = vmatpush.bf16.msra.mxu0 %v2745
        %2866 = vmatpush.bf16.msra.mxu0 %v2743
        %2867 = vmatpush.bf16.msra.mxu0 %v2741
        %2868 = vmatmul.bf16.gmra.mxu0 %v2431
        %v2869 = vpop.f32.mrf.mxu0
        %v2870 = vadd.f32 %v2857, %v2869
        %v2871 = vpop.f32.mrf.mxu0
        %2872 = vdwg.mxu0
        %2873 = vmatpush.bf16.msra.mxu0 %v2708
        %2874 = vmatpush.bf16.msra.mxu0 %v2706
        %2875 = vmatpush.bf16.msra.mxu0 %v2704
        %2876 = vmatpush.bf16.msra.mxu0 %v2702
        %2877 = vmatpush.bf16.msra.mxu0 %v2700
        %2878 = vmatpush.bf16.msra.mxu0 %v2698
        %2879 = vmatpush.bf16.msra.mxu0 %v2696
        %2880 = vmatpush.bf16.msra.mxu0 %v2694
        %2881 = vmatmul.bf16.gmra.mxu0 %v2428
        %v2882 = vpop.f32.mrf.mxu0
        %v2883 = vadd.f32 %v2498, %v2882
        %v2884 = vpop.f32.mrf.mxu0
        %2885 = vdwg.mxu0
        %2886 = vmatpush.bf16.msra.mxu0 %v2724
        %2887 = vmatpush.bf16.msra.mxu0 %v2722
        %2888 = vmatpush.bf16.msra.mxu0 %v2720
        %2889 = vmatpush.bf16.msra.mxu0 %v2718
        %2890 = vmatpush.bf16.msra.mxu0 %v2716
        %2891 = vmatpush.bf16.msra.mxu0 %v2714
        %2892 = vmatpush.bf16.msra.mxu0 %v2712
        %2893 = vmatpush.bf16.msra.mxu0 %v2710
        %2894 = vmatmul.bf16.gmra.mxu0 %v2429
        %v2895 = vpop.f32.mrf.mxu0
        %v2896 = vadd.f32 %v2883, %v2895
        %v2897 = vpop.f32.mrf.mxu0
        %2898 = vdwg.mxu0
        %2899 = vmatpush.bf16.msra.mxu0 %v2740
        %2900 = vmatpush.bf16.msra.mxu0 %v2738
        %2901 = vmatpush.bf16.msra.mxu0 %v2736
        %2902 = vmatpush.bf16.msra.mxu0 %v2734
        %2903 = vmatpush.bf16.msra.mxu0 %v2732
        %2904 = vmatpush.bf16.msra.mxu0 %v2730
        %2905 = vmatpush.bf16.msra.mxu0 %v2728
        %2906 = vmatpush.bf16.msra.mxu0 %v2726
        %2907 = vmatmul.bf16.gmra.mxu0 %v2430
        %v2908 = vpop.f32.mrf.mxu0
        %v2909 = vadd.f32 %v2896, %v2908
        %v2910 = vpop.f32.mrf.mxu0
        %2911 = vdwg.mxu0
        %2912 = vmatpush.bf16.msra.mxu0 %v2756
        %2913 = vmatpush.bf16.msra.mxu0 %v2754
        %2914 = vmatpush.bf16.msra.mxu0 %v2752
        %2915 = vmatpush.bf16.msra.mxu0 %v2750
        %2916 = vmatpush.bf16.msra.mxu0 %v2748
        %2917 = vmatpush.bf16.msra.mxu0 %v2746
        %2918 = vmatpush.bf16.msra.mxu0 %v2744
        %2919 = vmatpush.bf16.msra.mxu0 %v2742
        %2920 = vmatmul.bf16.gmra.mxu0 %v2431
        %v2921 = vpop.f32.mrf.mxu0
        %v2922 = vadd.f32 %v2909, %v2921
        %v2923 = vpop.f32.mrf.mxu0
        %2924 = vdwg.mxu0
        %v2925 = vmax.f32 %v2870, 0.0
        %v2926 = vmax.f32 %v2922, 0.0
        %v2927 = vld [vmem:[%s4] sm:$0xff]
        %v2928 = vld [vmem:[%s4 + $0x8] sm:$0xff]
        %v2929 = vld [vmem:[%s4 + $0x10] sm:$0xff]
        %v2930 = vld [vmem:[%s4 + $0x18] sm:$0xff]
        %v2931 = vld [vmem:[%s4 + $0x20] sm:$0xff]
        %v2932 = vld [vmem:[%s4 + $0x28] sm:$0xff]
        %v2933 = vld [vmem:[%s4 + $0x30] sm:$0xff]
        %v2934 = vld [vmem:[%s4 + $0x38] sm:$0xff]
        %v2935 = vld [vmem:[%s4 + $0x40] sm:$0xff]
        %v2936 = vld [vmem:[%s4 + $0x48] sm:$0xff]
        %v2937 = vld [vmem:[%s4 + $0x50] sm:$0xff]
        %v2938 = vld [vmem:[%s4 + $0x58] sm:$0xff]
        %v2939 = vld [vmem:[%s4 + $0x60] sm:$0xff]
        %v2940 = vld [vmem:[%s4 + $0x68] sm:$0xff]
        %v2941 = vld [vmem:[%s4 + $0x70] sm:$0xff]
        %v2942 = vld [vmem:[%s4 + $0x78] sm:$0xff]
        %v2943 = vld [vmem:[%s4 + $0x80] sm:$0xff]
        %v2944 = vld [vmem:[%s4 + $0x88] sm:$0xff]
        %v2945 = vld [vmem:[%s4 + $0x90] sm:$0xff]
        %v2946 = vld [vmem:[%s4 + $0x98] sm:$0xff]
        %v2947 = vld [vmem:[%s4 + $0xa0] sm:$0xff]
        %v2948 = vld [vmem:[%s4 + $0xa8] sm:$0xff]
        %v2949 = vld [vmem:[%s4 + $0xb0] sm:$0xff]
        %v2950 = vld [vmem:[%s4 + $0xb8] sm:$0xff]
        %v2951 = vld [vmem:[%s4 + $0xc0] sm:$0xff]
        %v2952 = vld [vmem:[%s4 + $0xc8] sm:$0xff]
        %v2953 = vld [vmem:[%s4 + $0xd0] sm:$0xff]
        %v2954 = vld [vmem:[%s4 + $0xd8] sm:$0xff]
        %v2955 = vld [vmem:[%s4 + $0xe0] sm:$0xff]
        %v2956 = vld [vmem:[%s4 + $0xe8] sm:$0xff]
        %v2957 = vld [vmem:[%s4 + $0xf0] sm:$0xff]
        %v2958 = vld [vmem:[%s4 + $0xf8] sm:$0xff]
        %2959 = vmatpush.msra.mxu0 %v2942
        %2960 = vmatpush.msra.mxu0 %v2941
        %2961 = vmatpush.msra.mxu0 %v2940
        %2962 = vmatpush.msra.mxu0 %v2939
        %2963 = vmatpush.msra.mxu0 %v2938
        %2964 = vmatpush.msra.mxu0 %v2937
        %2965 = vmatpush.msra.mxu0 %v2936
        %2966 = vmatpush.msra.mxu0 %v2935
        %2967 = vmatpush.msra.mxu0 %v2934
        %2968 = vmatpush.msra.mxu0 %v2933
        %2969 = vmatpush.msra.mxu0 %v2932
        %2970 = vmatpush.msra.mxu0 %v2931
        %2971 = vmatpush.msra.mxu0 %v2930
        %2972 = vmatpush.msra.mxu0 %v2929
        %2973 = vmatpush.msra.mxu0 %v2928
        %2974 = vmatpush.msra.mxu0 %v2927
        %2975 = vmatmul.f32.gmra.mxu0 %v2925
        %v2976 = vpop.f32.mrf.mxu0
        %v2977 = vadd.f32 %v2416, %v2976
        %2978 = vdwg.mxu0
        %2979 = vmatpush.msra.mxu0 %v2958
        %2980 = vmatpush.msra.mxu0 %v2957
        %2981 = vmatpush.msra.mxu0 %v2956
        %2982 = vmatpush.msra.mxu0 %v2955
        %2983 = vmatpush.msra.mxu0 %v2954
        %2984 = vmatpush.msra.mxu0 %v2953
        %2985 = vmatpush.msra.mxu0 %v2952
        %2986 = vmatpush.msra.mxu0 %v2951
        %2987 = vmatpush.msra.mxu0 %v2950
        %2988 = vmatpush.msra.mxu0 %v2949
        %2989 = vmatpush.msra.mxu0 %v2948
        %2990 = vmatpush.msra.mxu0 %v2947
        %2991 = vmatpush.msra.mxu0 %v2946
        %2992 = vmatpush.msra.mxu0 %v2945
        %2993 = vmatpush.msra.mxu0 %v2944
        %2994 = vmatpush.msra.mxu0 %v2943
        %2995 = vmatmul.f32.gmra.mxu0 %v2926
        %v2996 = vpop.f32.mrf.mxu0
        %v2997 = vadd.f32 %v2977, %v2996
        %2998 = vdwg.mxu0
        %v2999 = vmax.f32 %v2997, 0.0
        %v3000 = vld [vmem:[%s5] sm:$0xff]
        %v3001 = vld [vmem:[%s5 + $0x8] sm:$0xff]
        %v3002 = vld [vmem:[%s5 + $0x10] sm:$0xff]
        %v3003 = vld [vmem:[%s5 + $0x18] sm:$0xff]
        %v3004 = vld [vmem:[%s5 + $0x20] sm:$0xff]
        %v3005 = vld [vmem:[%s5 + $0x28] sm:$0xff]
        %v3006 = vld [vmem:[%s5 + $0x30] sm:$0xff]
        %v3007 = vld [vmem:[%s5 + $0x38] sm:$0xff]
        %v3008 = vld [vmem:[%s5 + $0x40] sm:$0xff]
        %v3009 = vld [vmem:[%s5 + $0x48] sm:$0xff]
        %v3010 = vld [vmem:[%s5 + $0x50] sm:$0xff]
        %v3011 = vld [vmem:[%s5 + $0x58] sm:$0xff]
        %v3012 = vld [vmem:[%s5 + $0x60] sm:$0xff]
        %v3013 = vld [vmem:[%s5 + $0x68] sm:$0xff]
        %v3014 = vld [vmem:[%s5 + $0x70] sm:$0xff]
        %v3015 = vld [vmem:[%s5 + $0x78] sm:$0xff]
        %3016 = vmatpush.msra.mxu0 %v3015
        %3017 = vmatpush.msra.mxu0 %v3014
        %3018 = vmatpush.msra.mxu0 %v3013
        %3019 = vmatpush.msra.mxu0 %v3012
        %3020 = vmatpush.msra.mxu0 %v3011
        %3021 = vmatpush.msra.mxu0 %v3010
        %3022 = vmatpush.msra.mxu0 %v3009
        %3023 = vmatpush.msra.mxu0 %v3008
        %3024 = vmatpush.msra.mxu0 %v3007
        %3025 = vmatpush.msra.mxu0 %v3006
        %3026 = vmatpush.msra.mxu0 %v3005
        %3027 = vmatpush.msra.mxu0 %v3004
        %3028 = vmatpush.msra.mxu0 %v3003
        %3029 = vmatpush.msra.mxu0 %v3002
        %3030 = vmatpush.msra.mxu0 %v3001
        %3031 = vmatpush.msra.mxu0 %v3000
        %3032 = vmatmul.f32.gmra.mxu0 %v2999
        %v3033 = vpop.f32.mrf.mxu0
        %v3034 = vadd.f32 %v2417, %v3033
        %3035 = vdwg.mxu0
        %v3036 = vmax.f32 %v3034, 0.0
        %v3037 = vmul.f32 %v3036, %v2418
        %vm3038 = vcmask 261120
        %v3039 = vsel %vm3038, %v3037, 0.0
        %3040 = vadd.xlane.f32.xlu0 %v3039
        %v3041 = vpop.xlane.xlu0 %3040
        %v3042 = vadd.f32 %v3041, %v2419
        %v3043 = vsub.f32 0.0, %v3042
        %v3044 = vmul.f32 %v3043, 1.442695
        %v3045 = vpow.pop %v3044
        %v3046 = vadd.f32 %v3045, 1.0
        %v3047 = vrcp.pop %v3046
        %v3048 = vmul.f32 %v3046, %v3047
        %v3049 = vsub.f32 1.0, %v3048
        %v3050 = vmul.f32 %v3047, %v3049
        %v3051 = vadd.f32 %v3047, %v3050
        %vm3052 = vweird.f32 %v3046
        %vm3053 = vweird.f32 %v3047
        %vm3054 = vmor %vm3052, %vm3053
        %v3055 = vsel %vm3054, %v3047, %v3051
        %v3056 = vand.u32 2147483647, %v3046
        %vm3057 = vcmp.eq.f32.partialorder %v3056, 8.507059e+37
        %v3058 = vand.u32 %v3046, 2147483648
        %v3059 = vor.u32 1.1754944e-38, %v3058
        %v3060 = vsel %vm3057, %v3059, %v3055
        %v3061 = vmul.f32 1.0, %v3060
        %vm3062 = vcmask 7168
        %3063 = vst.msk [vmem:[%s7] sm:$0xff] %vm3062, %v3061
      $region56: #{chess_evaluator.1} parent=47 // pred_fallthru
        _
      // Predicated region
      $region57: #{chess_evaluator.1} parent=47 // pred_check
        %p3064 = pneg %p183
      $region58: #{chess_evaluator.1} parent=47 // pred_check_branch
        %3066 = sbr.rel (%p3064) target = $region60
      $region59: #{chess_evaluator.1} parent=47 // pred_region
        _
      $region60: #{chess_evaluator.1} parent=47 // pred_fallthru
        _
      // Predicated region
      $region61: #{chess_evaluator.1} parent=47 // pred_check
        %p3067 = pneg %p183
      $region62: #{chess_evaluator.1} parent=47 // pred_check_branch
        %3069 = sbr.rel (%p3067) target = $region64
      $region63: #{chess_evaluator.1} parent=47 // pred_region
        _
      $region64: #{chess_evaluator.1} parent=47 // pred_fallthru
        _
    $region48: #{chess_evaluator.1} parent=5 // pred_fallthru
      _
    %p3070 = scmp.le.s32.totalorder 2, %s13
    // Predicated region
    $region65: #{chess_evaluator.1} parent=5 // pred_check
      %p3071 = pneg %p3070
    $region66: #{chess_evaluator.1} parent=5 // pred_check_branch
      %3073 = sbr.rel (%p3071) target = $region68
    $region67: #{chess_evaluator.1} parent=5 // pred_region
      %s3074 = ssub.s32 %s13, 2
    $region68: #{chess_evaluator.1} parent=5 // pred_fallthru
      _
  $region6: #{chess_evaluator.1} parent=0 // loop_footer
    %s17 = sadd.s32 1, %s13
  $region7: #{chess_evaluator.1} parent=0 // loop_footer_branch
    %12 = sbr.rel target = $region3
  $region8: #{chess_evaluator.1} parent=0 // loop_exit
    _

</llo_original>
